<compile_context>
chip_gen: v5e
topology: v5e:2x2
jax: 0.10.0
libtpu: 0.0.40
codegen_flags: <defaults>
</compile_context>

<pallas_src>
import numpy as np
import jax
import jax.numpy as jnp
from jax.experimental import pallas as pl
from jax.experimental.pallas import tpu as pltpu

DEFAULT = {'window_size': 2048, 'bin_size': 4, 'residual_blocks': 11,
           'dilation_mult': 1.5, 'filters0': 256, 'filters1': 128,
           'filters3': 2048, 'kernel0': 15, 'kernel1': 3, 'kernel2': 1,
           'dropout': 0.3, 'final_dropout': 0.05, 'use_map': False}

_BN_EPS = 1e-5


def _gelu(x):
    # TODO(synk): nn.GELU() default is the exact erf form; tanh approximation
    # is used because erf is not guaranteed to lower in Mosaic.
    return jax.nn.gelu(x, approximate=True)


def _dilations(cfg):
    dils, rate = [], 1.0
    for _ in range(cfg['residual_blocks']):
        dils.append(int(np.round(rate)))
        rate *= cfg['dilation_mult']
    return tuple(dils)


# ---------------------------------------------------------------------------
# The single fused kernel (one grid step per batch element).
# ---------------------------------------------------------------------------
def _make_fused_kernel(*, L2, C0, C1, K1, dils, P, fuse_taps):
    f32 = jnp.float32
    bf16 = jnp.bfloat16

    def kernel(xe_ref, xp_ref, w0_ref, b0_ref,
               wd_ref, sd_ref, bd_ref, wc_ref, sc_ref, bc_ref, vh_ref,
               o_ref, h_ref, pad_ref):
        # ---- stem: init conv (im2col matmul) + GELU, fused with the
        #      F.pad(x,(1,0)) + MaxPool1d(2): even/odd-phase windows were
        #      prepared in the wrapper so no strided slicing is needed here.
        w0 = w0_ref[...]
        b0 = b0_ref[...]
        h_even = _gelu(jnp.dot(xe_ref[0], w0, preferred_element_type=f32) + b0)
        h_prev = _gelu(jnp.dot(xp_ref[0], w0, preferred_element_type=f32) + b0)
        h_ref[...] = jnp.maximum(h_even, h_prev)        # (L2, C0) residual stream
        # row 0 of the "previous" phase is the F.pad zero (not gelu(b0)):
        h_ref[0:1, :] = jnp.maximum(h_even[0:1, :], 0.0)

        # Zero the halo bands of the padded dconv-input scratch once; scratch
        # persists across grid steps and only the interior [P:P+L2] is ever
        # rewritten, so the pads stay zero.
        if P > 0:
            @pl.when(pl.program_id(0) == 0)
            def _():
                pad_ref[0:P, :] = jnp.zeros((P, C0), bf16)
                pad_ref[P + L2:P + L2 + P, :] = jnp.zeros((P, C0), bf16)

        # ---- residual tower (fully unrolled; dilations are static ints) ----
        for i, d in enumerate(dils):
            total = d * (K1 - 1)
            left = total // 2                           # PyTorch 'same' split
            g = _gelu(h_ref[...]).astype(bf16)          # GELU in f32, store bf16
            pad_ref[P:P + L2, :] = g                    # P is 16-aligned
            taps = []
            for k in range(K1):
                off = P - left + k * d                  # static slice start
                taps.append(g if off == P else pad_ref[off:off + L2, :])
            if fuse_taps:
                # one big MXU matmul with K = K1*C0 (lane-concat im2col slab)
                slab = taps[0] if K1 == 1 else jnp.concatenate(taps, axis=-1)
                y = jnp.dot(slab, wd_ref[i], preferred_element_type=f32)
            else:
                acc = None
                for k in range(K1):
                    part = jnp.dot(taps[k], wd_ref[i, k],
                                   preferred_element_type=f32)
                    acc = part if acc is None else acc + part
                y = acc
            y = y * sd_ref[i] + bd_ref[i]               # folded BN affine (L2,C1)
            # pointwise ConvBlock (kernel2 == 1): GELU -> conv1x1 -> BN(gamma=0)
            z = jnp.dot(_gelu(y).astype(bf16), wc_ref[i],
                        preferred_element_type=f32)
            z = z * sc_ref[i] + bc_ref[i]
            # Dropout(p) is identity in eval mode; residual add
            h_ref[...] = h_ref[...] + z

        # ---- head: final 1x1 ConvBlock + BN + Linear(C3->1) folded into a
        #      single per-channel vector (precomputed in the wrapper, exact in
        #      eval mode): elementwise mul + lane reduction, no (L2,C3) tensor.
        gh = _gelu(h_ref[...])                          # (L2, C0) f32
        t = jnp.sum(gh * vh_ref[...], axis=-1, keepdims=True)
        o_ref[0] = t.astype(o_ref.dtype)

    return kernel


# ---------------------------------------------------------------------------
# Parameters (deterministic, PyTorch-default-style init, BN stats folded)
# ---------------------------------------------------------------------------
def init_params(key, cfg):
    C0, C1, C3 = cfg['filters0'], cfg['filters1'], cfg['filters3']
    K0, K1, K2 = cfg['kernel0'], cfg['kernel1'], cfg['kernel2']
    Cin = 4
    R = cfg['residual_blocks']
    bn_act = np.float32(1.0 / np.sqrt(1.0 + _BN_EPS))   # gamma=1, mean=0, var=1
    keys = iter(jax.random.split(key, 2 * R + 5))

    def uconv(K, cin, cout, k):
        bound = 1.0 / np.sqrt(cin * K)
        return jax.random.uniform(k, (K, cin, cout), jnp.float32, -bound, bound)

    p = {}
    # init conv (ConvNeXtV2Block approx): Conv1d(4, C0, K0, bias=True) + GELU
    # TODO(synk): ConvNeXtV2Block is not defined in the provided spec;
    # approximated as Conv1d(padding='same', bias) + GELU.
    p['w0'] = uconv(K0, Cin, C0, next(keys)).reshape(K0 * Cin, C0).astype(jnp.bfloat16)
    b0b = 1.0 / np.sqrt(Cin * K0)
    p['b0'] = jax.random.uniform(next(keys), (1, C0), jnp.float32, -b0b, b0b)

    wd = [uconv(K1, C0, C1, next(keys)) for _ in range(R)]          # (K1,C0,C1)
    wc = [uconv(K2, C1, C0, next(keys))[0] for _ in range(R)]       # (C1,C0)
    p['wd'] = jnp.stack(wd).astype(jnp.bfloat16)                    # (R,K1,C0,C1)
    p['sd'] = jnp.full((R, 1, C1), bn_act, jnp.float32)             # BN gamma=1
    p['bd'] = jnp.zeros((R, 1, C1), jnp.float32)
    p['wc'] = jnp.stack(wc).astype(jnp.bfloat16)                    # (R,C1,C0)
    p['sc'] = jnp.zeros((R, 1, C0), jnp.float32)                    # bn_gamma='zeros'
    p['bc'] = jnp.zeros((R, 1, C0), jnp.float32)

    p['wf'] = uconv(1, C0, C3, next(keys))[0]                       # (C0,C3) f32
    p['sf'] = jnp.full((1, C3), bn_act, jnp.float32)
    p['bf'] = jnp.zeros((1, C3), jnp.float32)

    lb = 1.0 / np.sqrt(C3)
    p['wl'] = jax.random.uniform(next(keys), (1, C3), jnp.float32, -lb, lb)
    p['bl'] = jax.random.uniform(next(keys), (1,), jnp.float32, -lb, lb)
    return p


# ---------------------------------------------------------------------------
# Forward pass
# ---------------------------------------------------------------------------
def convnext_dcnn_forward(params, x, cfg):
    """x: (B, L, 4) channel-last (PyTorch receives (B, L, 4) and transposes to
    NCL internally; here channel-last is kept throughout)."""
    B, L, Cin = x.shape
    C0, C1, C3 = cfg['filters0'], cfg['filters1'], cfg['filters3']
    K0, K1, K2 = cfg['kernel0'], cfg['kernel1'], cfg['kernel2']
    R = cfg['residual_blocks']
    assert Cin == 4 and L % 2 == 0
    assert K2 == 1  # TODO(synk): kernel2 != 1 not supported by the fused kernel
    dils = _dilations(cfg)
    L2 = L // 2
    pool = cfg['bin_size'] // 2
    assert L2 % pool == 0

    # halo needed for 'same' dilated convs; round up to the bf16 sublane tile
    # (16) so the per-block store / center tap are tile-aligned.
    P = 0
    for d in dils:
        total = d * (K1 - 1)
        P = max(P, total // 2, total - total // 2)
    P = ((P + 15) // 16) * 16 if P > 0 else 0

    # --- tiny wrapper-side prep (input is only (B, L, 4)): im2col the init
    #     conv and split into even / previous-odd phases so the left-pad +
    #     MaxPool1d(2) can be fused into the stem without strided kernel reads.
    total0 = K0 - 1
    left0 = total0 // 2
    xpad = jnp.pad(x, ((0, 0), (left0, total0 - left0), (0, 0)))
    xi = jnp.concatenate([xpad[:, k:k + L, :] for k in range(K0)], axis=-1)
    xi = xi.astype(jnp.bfloat16)                        # (B, L, K0*4)
    F0 = K0 * Cin
    x_even = xi[:, 0::2, :]                             # windows at 0,2,...,L-2
    x_prev = jnp.concatenate(                           # windows at -,1,...,L-3
        [jnp.zeros((B, 1, F0), xi.dtype), xi[:, 1:L - 1:2, :]], axis=1)

    # --- fold final 1x1 conv + BN + Linear(C3->1) into one (1, C0) f32 vector
    #     plus a scalar (exact in eval mode; pooling and Linear commute).
    head_scale = (params['sf'][0] * params['wl'][0])                # (C3,)
    vh = (params['wf'] * head_scale[None, :]).sum(axis=1)[None, :]  # (1, C0)
    vh = vh.astype(jnp.float32)
    bhead = jnp.sum(params['bf'] * params['wl'])                    # scalar

    # --- dilated-conv weight layout: fused single-matmul path needs
    #     (R, K1*C0, C1); fallback per-tap path uses (R, K1, C0, C1).
    fuse_taps = (K1 > 1) and (C0 % 128 == 0)
    if fuse_taps:
        wd_arg = params['wd'].reshape(R, K1 * C0, C1)
        wd_spec = pl.BlockSpec((R, K1 * C0, C1), lambda b: (0, 0, 0))
    else:
        wd_arg = params['wd']
        wd_spec = pl.BlockSpec((R, K1, C0, C1), lambda b: (0, 0, 0, 0))

    kern = _make_fused_kernel(L2=L2, C0=C0, C1=C1, K1=K1,
                              dils=dils, P=P, fuse_taps=fuse_taps)

    t = pl.pallas_call(
        kern,
        out_shape=jax.ShapeDtypeStruct((B, L2, 1), jnp.float32),
        grid=(B,),
        in_specs=[
            pl.BlockSpec((1, L2, F0), lambda b: (b, 0, 0)),        # x_even
            pl.BlockSpec((1, L2, F0), lambda b: (b, 0, 0)),        # x_prev
            pl.BlockSpec((F0, C0), lambda b: (0, 0)),              # w0
            pl.BlockSpec((1, C0), lambda b: (0, 0)),               # b0
            wd_spec,                                               # wd
            pl.BlockSpec((R, 1, C1), lambda b: (0, 0, 0)),         # sd
            pl.BlockSpec((R, 1, C1), lambda b: (0, 0, 0)),         # bd
            pl.BlockSpec((R, C1, C0), lambda b: (0, 0, 0)),        # wc
            pl.BlockSpec((R, 1, C0), lambda b: (0, 0, 0)),         # sc
            pl.BlockSpec((R, 1, C0), lambda b: (0, 0, 0)),         # bc
            pl.BlockSpec((1, C0), lambda b: (0, 0)),               # vh (folded head)
        ],
        out_specs=pl.BlockSpec((1, L2, 1), lambda b: (b, 0, 0)),
        scratch_shapes=[
            pltpu.VMEM((L2, C0), jnp.float32),                     # residual stream h
            pltpu.VMEM((L2 + 2 * P, C0), jnp.bfloat16),            # padded gelu(h)
        ],
        compiler_params=pltpu.CompilerParams(
            dimension_semantics=("parallel",),   # keep B even for v7x's 2 cores
            vmem_limit_bytes=48 * 1024 * 1024),
    )(x_even, x_prev, params['w0'], params['b0'],
      wd_arg, params['sd'], params['bd'],
      params['wc'], params['sc'], params['bc'], vh)

    # AvgPool1d(pool) + folded-head constant + Linear bias + Softplus; the
    # Linear weight/BN of the head were applied pre-pool inside the kernel
    # (exact — pooling is linear), so this epilogue touches only (B, L2).
    tt = t[:, :, 0]                                      # (B, L2)
    pooled = tt.reshape(B, L2 // pool, pool).mean(axis=-1)
    out = jax.nn.softplus(pooled + bhead + params['bl'][0])
    return out[:, :, None]                               # (B, L2//pool, 1)


if __name__ == "__main__":
    key = jax.random.PRNGKey(0)
    k1, k2, k3, k4 = jax.random.split(key, 4)

    def run(cfg_updates, pkey, xkey):
        cfg = dict(DEFAULT)
        cfg.update(cfg_updates)
        params = init_params(pkey, cfg)
        B, L = 2, cfg['window_size']
        x = jax.random.normal(xkey, (B, L, 4), dtype=jnp.float32)
        out = jax.block_until_ready(convnext_dcnn_forward(params, x, cfg))
        expected = (B, (L // 2) // (cfg['bin_size'] // 2), 1)
        assert out.shape == expected, (out.shape, expected)
        assert bool(jnp.all(jnp.isfinite(out)))
        assert bool(jnp.all(out >= 0.0))                 # softplus output
        return out

    # small config exercising the per-tap accumulation path (C0 % 128 != 0)
    run(dict(window_size=64, bin_size=4, residual_blocks=2, dilation_mult=1.5,
             filters0=32, filters1=16, filters3=64,
             kernel0=7, kernel1=3, kernel2=1), k1, k2)
    # small config exercising the fused single-matmul tap path (C0 = 128)
    run(dict(window_size=64, bin_size=4, residual_blocks=2, dilation_mult=1.5,
             filters0=128, filters1=64, filters3=128,
             kernel0=7, kernel1=3, kernel2=1), k3, k4)

    print("KERNEL_OK")
</pallas_src>

<mosaic_0001>
module attributes {stable_mosaic.version = 11 : i64} {
  func.func @kernel(%arg0: i32, %arg1: memref<1x32x28xbf16, #tpu.memory_space<vmem>>, %arg2: memref<1x32x28xbf16, #tpu.memory_space<vmem>>, %arg3: memref<28x32xbf16, #tpu.memory_space<vmem>>, %arg4: memref<1x32xf32, #tpu.memory_space<vmem>>, %arg5: memref<2x3x32x16xbf16, #tpu.memory_space<vmem>>, %arg6: memref<2x1x16xf32, #tpu.memory_space<vmem>>, %arg7: memref<2x1x16xf32, #tpu.memory_space<vmem>>, %arg8: memref<2x16x32xbf16, #tpu.memory_space<vmem>>, %arg9: memref<2x1x32xf32, #tpu.memory_space<vmem>>, %arg10: memref<2x1x32xf32, #tpu.memory_space<vmem>>, %arg11: memref<1x32xf32, #tpu.memory_space<vmem>>, %arg12: memref<1x32x1xf32, #tpu.memory_space<vmem>>, %arg13: memref<32x32xf32, #tpu.memory_space<vmem>>, %arg14: memref<64x32xbf16, #tpu.memory_space<vmem>>) attributes {dimension_semantics = [#tpu.dimension_semantics<parallel>], iteration_bounds = array<i64: 2>, scalar_prefetch = 0 : i64, scratch_operands = 2 : i64, tpu.core_type = #tpu.core_type<tc>, window_params = [{transform_indices = @transform_0, window_bounds = array<i64: 1, 32, 28>}, {transform_indices = @transform_1, window_bounds = array<i64: 1, 32, 28>}, {pipeline_mode = #tpu.pipeline_mode<synchronous>, transform_indices = @transform_2, window_bounds = array<i64: 28, 32>}, {pipeline_mode = #tpu.pipeline_mode<synchronous>, transform_indices = @transform_3, window_bounds = array<i64: 1, 32>}, {pipeline_mode = #tpu.pipeline_mode<synchronous>, transform_indices = @transform_4, window_bounds = array<i64: 2, 3, 32, 16>}, {pipeline_mode = #tpu.pipeline_mode<synchronous>, transform_indices = @transform_5, window_bounds = array<i64: 2, 1, 16>}, {pipeline_mode = #tpu.pipeline_mode<synchronous>, transform_indices = @transform_6, window_bounds = array<i64: 2, 1, 16>}, {pipeline_mode = #tpu.pipeline_mode<synchronous>, transform_indices = @transform_7, window_bounds = array<i64: 2, 16, 32>}, {pipeline_mode = #tpu.pipeline_mode<synchronous>, transform_indices = @transform_8, window_bounds = array<i64: 2, 1, 32>}, {pipeline_mode = #tpu.pipeline_mode<synchronous>, transform_indices = @transform_9, window_bounds = array<i64: 2, 1, 32>}, {pipeline_mode = #tpu.pipeline_mode<synchronous>, transform_indices = @transform_10, window_bounds = array<i64: 1, 32>}, {transform_indices = @transform_11, window_bounds = array<i64: 1, 32, 1>}]} {
    %c0 = arith.constant 0 : index
    %c0_0 = arith.constant 0 : index
    %0 = vector.load %arg3[%c0, %c0_0] : memref<28x32xbf16, #tpu.memory_space<vmem>>, vector<28x32xbf16>
    %c0_1 = arith.constant 0 : index
    %c0_2 = arith.constant 0 : index
    %1 = vector.load %arg4[%c0_1, %c0_2] : memref<1x32xf32, #tpu.memory_space<vmem>>, vector<1x32xf32>
    %c0_3 = arith.constant 0 : index
    %c0_4 = arith.constant 0 : index
    %c0_5 = arith.constant 0 : index
    %2 = vector.load %arg1[%c0_3, %c0_4, %c0_5] : memref<1x32x28xbf16, #tpu.memory_space<vmem>>, vector<1x32x28xbf16>
    %3 = vector.shape_cast %2 : vector<1x32x28xbf16> to vector<32x28xbf16>
    %cst = arith.constant dense<0.000000e+00> : vector<32x32xf32>
    %4 = tpu.matmul %3, %0, %cst {dimension_numbers = #tpu.dot_dimension_numbers<[1], [0], [0], [1], [0, 0, 1, 1], [], []>} : vector<32x28xbf16>, vector<28x32xbf16>, vector<32x32xf32> -> vector<32x32xf32>
    %5 = vector.broadcast %1 : vector<1x32xf32> to vector<32x32xf32>
    %6 = arith.addf %4, %5 : vector<32x32xf32>
    %7 = arith.mulf %6, %6 : vector<32x32xf32>
    %8 = arith.mulf %6, %7 : vector<32x32xf32>
    %cst_6 = arith.constant 4.471500e-02 : f32
    %9 = vector.broadcast %cst_6 : f32 to vector<32x32xf32>
    %10 = arith.mulf %9, %8 : vector<32x32xf32>
    %11 = arith.addf %6, %10 : vector<32x32xf32>
    %cst_7 = arith.constant 0.797884583 : f32
    %12 = vector.broadcast %cst_7 : f32 to vector<32x32xf32>
    %13 = arith.mulf %12, %11 : vector<32x32xf32>
    %14 = math.tanh %13 : vector<32x32xf32>
    %cst_8 = arith.constant 1.000000e+00 : f32
    %15 = vector.broadcast %cst_8 : f32 to vector<32x32xf32>
    %16 = arith.addf %15, %14 : vector<32x32xf32>
    %cst_9 = arith.constant 5.000000e-01 : f32
    %17 = vector.broadcast %cst_9 : f32 to vector<32x32xf32>
    %18 = arith.mulf %17, %16 : vector<32x32xf32>
    %19 = arith.mulf %6, %18 : vector<32x32xf32>
    %c0_10 = arith.constant 0 : index
    %c0_11 = arith.constant 0 : index
    %c0_12 = arith.constant 0 : index
    %20 = vector.load %arg2[%c0_10, %c0_11, %c0_12] : memref<1x32x28xbf16, #tpu.memory_space<vmem>>, vector<1x32x28xbf16>
    %21 = vector.shape_cast %20 : vector<1x32x28xbf16> to vector<32x28xbf16>
    %cst_13 = arith.constant dense<0.000000e+00> : vector<32x32xf32>
    %22 = tpu.matmul %21, %0, %cst_13 {dimension_numbers = #tpu.dot_dimension_numbers<[1], [0], [0], [1], [0, 0, 1, 1], [], []>} : vector<32x28xbf16>, vector<28x32xbf16>, vector<32x32xf32> -> vector<32x32xf32>
    %23 = vector.broadcast %1 : vector<1x32xf32> to vector<32x32xf32>
    %24 = arith.addf %22, %23 : vector<32x32xf32>
    %25 = arith.mulf %24, %24 : vector<32x32xf32>
    %26 = arith.mulf %24, %25 : vector<32x32xf32>
    %cst_14 = arith.constant 4.471500e-02 : f32
    %27 = vector.broadcast %cst_14 : f32 to vector<32x32xf32>
    %28 = arith.mulf %27, %26 : vector<32x32xf32>
    %29 = arith.addf %24, %28 : vector<32x32xf32>
    %cst_15 = arith.constant 0.797884583 : f32
    %30 = vector.broadcast %cst_15 : f32 to vector<32x32xf32>
    %31 = arith.mulf %30, %29 : vector<32x32xf32>
    %32 = math.tanh %31 : vector<32x32xf32>
    %cst_16 = arith.constant 1.000000e+00 : f32
    %33 = vector.broadcast %cst_16 : f32 to vector<32x32xf32>
    %34 = arith.addf %33, %32 : vector<32x32xf32>
    %cst_17 = arith.constant 5.000000e-01 : f32
    %35 = vector.broadcast %cst_17 : f32 to vector<32x32xf32>
    %36 = arith.mulf %35, %34 : vector<32x32xf32>
    %37 = arith.mulf %24, %36 : vector<32x32xf32>
    %38 = arith.maximumf %19, %37 : vector<32x32xf32>
    %c0_18 = arith.constant 0 : index
    %c0_19 = arith.constant 0 : index
    %39 = vector.load %arg13[%c0_18, %c0_19] : memref<32x32xf32, #tpu.memory_space<vmem>>, vector<32x32xf32>
    tpu.vector_store %arg13[%c0_18, %c0_19], %38 {strides = array<i32>} : memref<32x32xf32, #tpu.memory_space<vmem>>, vector<32x32xf32>,
    %40 = vector.extract_strided_slice %19 {offsets = [0, 0], sizes = [1, 32], strides = [1, 1]} : vector<32x32xf32> to vector<1x32xf32>
    %cst_20 = arith.constant 0.000000e+00 : f32
    %41 = vector.broadcast %cst_20 : f32 to vector<1x32xf32>
    %42 = arith.maximumf %40, %41 : vector<1x32xf32>
    %c0_21 = arith.constant 0 : index
    %c0_22 = arith.constant 0 : index
    %43 = vector.load %arg13[%c0_21, %c0_22] : memref<32x32xf32, #tpu.memory_space<vmem>>, vector<1x32xf32>
    tpu.vector_store %arg13[%c0_21, %c0_22], %42 {strides = array<i32>} : memref<32x32xf32, #tpu.memory_space<vmem>>, vector<1x32xf32>,
    %c0_i32 = arith.constant 0 : i32
    %44 = arith.cmpi eq, %arg0, %c0_i32 : i32
    %45 = arith.extui %44 : i1 to i32
    %c0_i32_23 = arith.constant 0 : i32
    %46 = arith.cmpi ne, %45, %c0_i32_23 : i32
    scf.if %46 {
      %cst_131 = arith.constant 0.000000e+00 : bf16
      %199 = vector.broadcast %cst_131 : bf16 to vector<16x32xbf16>
      %c0_132 = arith.constant 0 : index
      %c0_133 = arith.constant 0 : index
      %200 = vector.load %arg14[%c0_132, %c0_133] : memref<64x32xbf16, #tpu.memory_space<vmem>>, vector<16x32xbf16>
      tpu.vector_store %arg14[%c0_132, %c0_133], %199 {strides = array<i32>} : memref<64x32xbf16, #tpu.memory_space<vmem>>, vector<16x32xbf16>,
      %cst_134 = arith.constant 0.000000e+00 : bf16
      %201 = vector.broadcast %cst_134 : bf16 to vector<16x32xbf16>
      %c48 = arith.constant 48 : index
      %c0_135 = arith.constant 0 : index
      %202 = vector.load %arg14[%c48, %c0_135] : memref<64x32xbf16, #tpu.memory_space<vmem>>, vector<16x32xbf16>
      tpu.vector_store %arg14[%c48, %c0_135], %201 {strides = array<i32>} : memref<64x32xbf16, #tpu.memory_space<vmem>>, vector<16x32xbf16>,
    } else {
    }
    %c0_24 = arith.constant 0 : index
    %c0_25 = arith.constant 0 : index
    %47 = vector.load %arg13[%c0_24, %c0_25] : memref<32x32xf32, #tpu.memory_space<vmem>>, vector<32x32xf32>
    %48 = arith.mulf %47, %47 : vector<32x32xf32>
    %49 = arith.mulf %47, %48 : vector<32x32xf32>
    %cst_26 = arith.constant 4.471500e-02 : f32
    %50 = vector.broadcast %cst_26 : f32 to vector<32x32xf32>
    %51 = arith.mulf %50, %49 : vector<32x32xf32>
    %52 = arith.addf %47, %51 : vector<32x32xf32>
    %cst_27 = arith.constant 0.797884583 : f32
    %53 = vector.broadcast %cst_27 : f32 to vector<32x32xf32>
    %54 = arith.mulf %53, %52 : vector<32x32xf32>
    %55 = math.tanh %54 : vector<32x32xf32>
    %cst_28 = arith.constant 1.000000e+00 : f32
    %56 = vector.broadcast %cst_28 : f32 to vector<32x32xf32>
    %57 = arith.addf %56, %55 : vector<32x32xf32>
    %cst_29 = arith.constant 5.000000e-01 : f32
    %58 = vector.broadcast %cst_29 : f32 to vector<32x32xf32>
    %59 = arith.mulf %58, %57 : vector<32x32xf32>
    %60 = arith.mulf %47, %59 : vector<32x32xf32>
    %61 = arith.truncf %60 : vector<32x32xf32> to vector<32x32xbf16>
    %c16 = arith.constant 16 : index
    %c0_30 = arith.constant 0 : index
    %62 = vector.load %arg14[%c16, %c0_30] : memref<64x32xbf16, #tpu.memory_space<vmem>>, vector<32x32xbf16>
    tpu.vector_store %arg14[%c16, %c0_30], %61 {strides = array<i32>} : memref<64x32xbf16, #tpu.memory_space<vmem>>, vector<32x32xbf16>,
    %c15 = arith.constant 15 : index
    %c0_31 = arith.constant 0 : index
    %63 = vector.load %arg14[%c15, %c0_31] : memref<64x32xbf16, #tpu.memory_space<vmem>>, vector<32x32xbf16>
    %c17 = arith.constant 17 : index
    %c0_32 = arith.constant 0 : index
    %64 = vector.load %arg14[%c17, %c0_32] : memref<64x32xbf16, #tpu.memory_space<vmem>>, vector<32x32xbf16>
    %c0_33 = arith.constant 0 : index
    %c0_34 = arith.constant 0 : index
    %c0_35 = arith.constant 0 : index
    %c0_36 = arith.constant 0 : index
    %65 = vector.load %arg5[%c0_33, %c0_34, %c0_35, %c0_36] : memref<2x3x32x16xbf16, #tpu.memory_space<vmem>>, vector<1x1x32x16xbf16>
    %66 = vector.shape_cast %65 : vector<1x1x32x16xbf16> to vector<32x16xbf16>
    %cst_37 = arith.constant dense<0.000000e+00> : vector<32x16xf32>
    %67 = tpu.matmul %63, %66, %cst_37 {dimension_numbers = #tpu.dot_dimension_numbers<[1], [0], [0], [1], [0, 0, 1, 1], [], []>} : vector<32x32xbf16>, vector<32x16xbf16>, vector<32x16xf32> -> vector<32x16xf32>
    %c0_38 = arith.constant 0 : index
    %c1 = arith.constant 1 : index
    %c0_39 = arith.constant 0 : index
    %c0_40 = arith.constant 0 : index
    %68 = vector.load %arg5[%c0_38, %c1, %c0_39, %c0_40] : memref<2x3x32x16xbf16, #tpu.memory_space<vmem>>, vector<1x1x32x16xbf16>
    %69 = vector.shape_cast %68 : vector<1x1x32x16xbf16> to vector<32x16xbf16>
    %cst_41 = arith.constant dense<0.000000e+00> : vector<32x16xf32>
    %70 = tpu.matmul %61, %69, %cst_41 {dimension_numbers = #tpu.dot_dimension_numbers<[1], [0], [0], [1], [0, 0, 1, 1], [], []>} : vector<32x32xbf16>, vector<32x16xbf16>, vector<32x16xf32> -> vector<32x16xf32>
    %71 = arith.addf %67, %70 : vector<32x16xf32>
    %c0_42 = arith.constant 0 : index
    %c2 = arith.constant 2 : index
    %c0_43 = arith.constant 0 : index
    %c0_44 = arith.constant 0 : index
    %72 = vector.load %arg5[%c0_42, %c2, %c0_43, %c0_44] : memref<2x3x32x16xbf16, #tpu.memory_space<vmem>>, vector<1x1x32x16xbf16>
    %73 = vector.shape_cast %72 : vector<1x1x32x16xbf16> to vector<32x16xbf16>
    %cst_45 = arith.constant dense<0.000000e+00> : vector<32x16xf32>
    %74 = tpu.matmul %64, %73, %cst_45 {dimension_numbers = #tpu.dot_dimension_numbers<[1], [0], [0], [1], [0, 0, 1, 1], [], []>} : vector<32x32xbf16>, vector<32x16xbf16>, vector<32x16xf32> -> vector<32x16xf32>
    %75 = arith.addf %71, %74 : vector<32x16xf32>
    %c0_46 = arith.constant 0 : index
    %c0_47 = arith.constant 0 : index
    %c0_48 = arith.constant 0 : index
    %76 = vector.load %arg6[%c0_46, %c0_47, %c0_48] : memref<2x1x16xf32, #tpu.memory_space<vmem>>, vector<1x1x16xf32>
    %77 = vector.shape_cast %76 : vector<1x1x16xf32> to vector<1x16xf32>
    %78 = vector.broadcast %77 : vector<1x16xf32> to vector<32x16xf32>
    %79 = arith.mulf %75, %78 : vector<32x16xf32>
    %c0_49 = arith.constant 0 : index
    %c0_50 = arith.constant 0 : index
    %c0_51 = arith.constant 0 : index
    %80 = vector.load %arg7[%c0_49, %c0_50, %c0_51] : memref<2x1x16xf32, #tpu.memory_space<vmem>>, vector<1x1x16xf32>
    %81 = vector.shape_cast %80 : vector<1x1x16xf32> to vector<1x16xf32>
    %82 = vector.broadcast %81 : vector<1x16xf32> to vector<32x16xf32>
    %83 = arith.addf %79, %82 : vector<32x16xf32>
    %84 = arith.mulf %83, %83 : vector<32x16xf32>
    %85 = arith.mulf %83, %84 : vector<32x16xf32>
    %cst_52 = arith.constant 4.471500e-02 : f32
    %86 = vector.broadcast %cst_52 : f32 to vector<32x16xf32>
    %87 = arith.mulf %86, %85 : vector<32x16xf32>
    %88 = arith.addf %83, %87 : vector<32x16xf32>
    %cst_53 = arith.constant 0.797884583 : f32
    %89 = vector.broadcast %cst_53 : f32 to vector<32x16xf32>
    %90 = arith.mulf %89, %88 : vector<32x16xf32>
    %91 = math.tanh %90 : vector<32x16xf32>
    %cst_54 = arith.constant 1.000000e+00 : f32
    %92 = vector.broadcast %cst_54 : f32 to vector<32x16xf32>
    %93 = arith.addf %92, %91 : vector<32x16xf32>
    %cst_55 = arith.constant 5.000000e-01 : f32
    %94 = vector.broadcast %cst_55 : f32 to vector<32x16xf32>
    %95 = arith.mulf %94, %93 : vector<32x16xf32>
    %96 = arith.mulf %83, %95 : vector<32x16xf32>
    %97 = arith.truncf %96 : vector<32x16xf32> to vector<32x16xbf16>
    %c0_56 = arith.constant 0 : index
    %c0_57 = arith.constant 0 : index
    %c0_58 = arith.constant 0 : index
    %98 = vector.load %arg8[%c0_56, %c0_57, %c0_58] : memref<2x16x32xbf16, #tpu.memory_space<vmem>>, vector<1x16x32xbf16>
    %99 = vector.shape_cast %98 : vector<1x16x32xbf16> to vector<16x32xbf16>
    %cst_59 = arith.constant dense<0.000000e+00> : vector<32x32xf32>
    %100 = tpu.matmul %97, %99, %cst_59 {dimension_numbers = #tpu.dot_dimension_numbers<[1], [0], [0], [1], [0, 0, 1, 1], [], []>} : vector<32x16xbf16>, vector<16x32xbf16>, vector<32x32xf32> -> vector<32x32xf32>
    %c0_60 = arith.constant 0 : index
    %c0_61 = arith.constant 0 : index
    %c0_62 = arith.constant 0 : index
    %101 = vector.load %arg9[%c0_60, %c0_61, %c0_62] : memref<2x1x32xf32, #tpu.memory_space<vmem>>, vector<1x1x32xf32>
    %102 = vector.shape_cast %101 : vector<1x1x32xf32> to vector<1x32xf32>
    %103 = vector.broadcast %102 : vector<1x32xf32> to vector<32x32xf32>
    %104 = arith.mulf %100, %103 : vector<32x32xf32>
    %c0_63 = arith.constant 0 : index
    %c0_64 = arith.constant 0 : index
    %c0_65 = arith.constant 0 : index
    %105 = vector.load %arg10[%c0_63, %c0_64, %c0_65] : memref<2x1x32xf32, #tpu.memory_space<vmem>>, vector<1x1x32xf32>
    %106 = vector.shape_cast %105 : vector<1x1x32xf32> to vector<1x32xf32>
    %107 = vector.broadcast %106 : vector<1x32xf32> to vector<32x32xf32>
    %108 = arith.addf %104, %107 : vector<32x32xf32>
    %c0_66 = arith.constant 0 : index
    %c0_67 = arith.constant 0 : index
    %109 = vector.load %arg13[%c0_66, %c0_67] : memref<32x32xf32, #tpu.memory_space<vmem>>, vector<32x32xf32>
    %110 = arith.addf %109, %108 : vector<32x32xf32>
    %c0_68 = arith.constant 0 : index
    %c0_69 = arith.constant 0 : index
    %111 = vector.load %arg13[%c0_68, %c0_69] : memref<32x32xf32, #tpu.memory_space<vmem>>, vector<32x32xf32>
    tpu.vector_store %arg13[%c0_68, %c0_69], %110 {strides = array<i32>} : memref<32x32xf32, #tpu.memory_space<vmem>>, vector<32x32xf32>,
    %c0_70 = arith.constant 0 : index
    %c0_71 = arith.constant 0 : index
    %112 = vector.load %arg13[%c0_70, %c0_71] : memref<32x32xf32, #tpu.memory_space<vmem>>, vector<32x32xf32>
    %113 = arith.mulf %112, %112 : vector<32x32xf32>
    %114 = arith.mulf %112, %113 : vector<32x32xf32>
    %cst_72 = arith.constant 4.471500e-02 : f32
    %115 = vector.broadcast %cst_72 : f32 to vector<32x32xf32>
    %116 = arith.mulf %115, %114 : vector<32x32xf32>
    %117 = arith.addf %112, %116 : vector<32x32xf32>
    %cst_73 = arith.constant 0.797884583 : f32
    %118 = vector.broadcast %cst_73 : f32 to vector<32x32xf32>
    %119 = arith.mulf %118, %117 : vector<32x32xf32>
    %120 = math.tanh %119 : vector<32x32xf32>
    %cst_74 = arith.constant 1.000000e+00 : f32
    %121 = vector.broadcast %cst_74 : f32 to vector<32x32xf32>
    %122 = arith.addf %121, %120 : vector<32x32xf32>
    %cst_75 = arith.constant 5.000000e-01 : f32
    %123 = vector.broadcast %cst_75 : f32 to vector<32x32xf32>
    %124 = arith.mulf %123, %122 : vector<32x32xf32>
    %125 = arith.mulf %112, %124 : vector<32x32xf32>
    %126 = arith.truncf %125 : vector<32x32xf32> to vector<32x32xbf16>
    %c16_76 = arith.constant 16 : index
    %c0_77 = arith.constant 0 : index
    %127 = vector.load %arg14[%c16_76, %c0_77] : memref<64x32xbf16, #tpu.memory_space<vmem>>, vector<32x32xbf16>
    tpu.vector_store %arg14[%c16_76, %c0_77], %126 {strides = array<i32>} : memref<64x32xbf16, #tpu.memory_space<vmem>>, vector<32x32xbf16>,
    %c14 = arith.constant 14 : index
    %c0_78 = arith.constant 0 : index
    %128 = vector.load %arg14[%c14, %c0_78] : memref<64x32xbf16, #tpu.memory_space<vmem>>, vector<32x32xbf16>
    %c18 = arith.constant 18 : index
    %c0_79 = arith.constant 0 : index
    %129 = vector.load %arg14[%c18, %c0_79] : memref<64x32xbf16, #tpu.memory_space<vmem>>, vector<32x32xbf16>
    %c1_80 = arith.constant 1 : index
    %c0_81 = arith.constant 0 : index
    %c0_82 = arith.constant 0 : index
    %c0_83 = arith.constant 0 : index
    %130 = vector.load %arg5[%c1_80, %c0_81, %c0_82, %c0_83] : memref<2x3x32x16xbf16, #tpu.memory_space<vmem>>, vector<1x1x32x16xbf16>
    %131 = vector.shape_cast %130 : vector<1x1x32x16xbf16> to vector<32x16xbf16>
    %cst_84 = arith.constant dense<0.000000e+00> : vector<32x16xf32>
    %132 = tpu.matmul %128, %131, %cst_84 {dimension_numbers = #tpu.dot_dimension_numbers<[1], [0], [0], [1], [0, 0, 1, 1], [], []>} : vector<32x32xbf16>, vector<32x16xbf16>, vector<32x16xf32> -> vector<32x16xf32>
    %c1_85 = arith.constant 1 : index
    %c1_86 = arith.constant 1 : index
    %c0_87 = arith.constant 0 : index
    %c0_88 = arith.constant 0 : index
    %133 = vector.load %arg5[%c1_85, %c1_86, %c0_87, %c0_88] : memref<2x3x32x16xbf16, #tpu.memory_space<vmem>>, vector<1x1x32x16xbf16>
    %134 = vector.shape_cast %133 : vector<1x1x32x16xbf16> to vector<32x16xbf16>
    %cst_89 = arith.constant dense<0.000000e+00> : vector<32x16xf32>
    %135 = tpu.matmul %126, %134, %cst_89 {dimension_numbers = #tpu.dot_dimension_numbers<[1], [0], [0], [1], [0, 0, 1, 1], [], []>} : vector<32x32xbf16>, vector<32x16xbf16>, vector<32x16xf32> -> vector<32x16xf32>
    %136 = arith.addf %132, %135 : vector<32x16xf32>
    %c1_90 = arith.constant 1 : index
    %c2_91 = arith.constant 2 : index
    %c0_92 = arith.constant 0 : index
    %c0_93 = arith.constant 0 : index
    %137 = vector.load %arg5[%c1_90, %c2_91, %c0_92, %c0_93] : memref<2x3x32x16xbf16, #tpu.memory_space<vmem>>, vector<1x1x32x16xbf16>
    %138 = vector.shape_cast %137 : vector<1x1x32x16xbf16> to vector<32x16xbf16>
    %cst_94 = arith.constant dense<0.000000e+00> : vector<32x16xf32>
    %139 = tpu.matmul %129, %138, %cst_94 {dimension_numbers = #tpu.dot_dimension_numbers<[1], [0], [0], [1], [0, 0, 1, 1], [], []>} : vector<32x32xbf16>, vector<32x16xbf16>, vector<32x16xf32> -> vector<32x16xf32>
    %140 = arith.addf %136, %139 : vector<32x16xf32>
    %c1_95 = arith.constant 1 : index
    %c0_96 = arith.constant 0 : index
    %c0_97 = arith.constant 0 : index
    %141 = vector.load %arg6[%c1_95, %c0_96, %c0_97] : memref<2x1x16xf32, #tpu.memory_space<vmem>>, vector<1x1x16xf32>
    %142 = vector.shape_cast %141 : vector<1x1x16xf32> to vector<1x16xf32>
    %143 = vector.broadcast %142 : vector<1x16xf32> to vector<32x16xf32>
    %144 = arith.mulf %140, %143 : vector<32x16xf32>
    %c1_98 = arith.constant 1 : index
    %c0_99 = arith.constant 0 : index
    %c0_100 = arith.constant 0 : index
    %145 = vector.load %arg7[%c1_98, %c0_99, %c0_100] : memref<2x1x16xf32, #tpu.memory_space<vmem>>, vector<1x1x16xf32>
    %146 = vector.shape_cast %145 : vector<1x1x16xf32> to vector<1x16xf32>
    %147 = vector.broadcast %146 : vector<1x16xf32> to vector<32x16xf32>
    %148 = arith.addf %144, %147 : vector<32x16xf32>
    %149 = arith.mulf %148, %148 : vector<32x16xf32>
    %150 = arith.mulf %148, %149 : vector<32x16xf32>
    %cst_101 = arith.constant 4.471500e-02 : f32
    %151 = vector.broadcast %cst_101 : f32 to vector<32x16xf32>
    %152 = arith.mulf %151, %150 : vector<32x16xf32>
    %153 = arith.addf %148, %152 : vector<32x16xf32>
    %cst_102 = arith.constant 0.797884583 : f32
    %154 = vector.broadcast %cst_102 : f32 to vector<32x16xf32>
    %155 = arith.mulf %154, %153 : vector<32x16xf32>
    %156 = math.tanh %155 : vector<32x16xf32>
    %cst_103 = arith.constant 1.000000e+00 : f32
    %157 = vector.broadcast %cst_103 : f32 to vector<32x16xf32>
    %158 = arith.addf %157, %156 : vector<32x16xf32>
    %cst_104 = arith.constant 5.000000e-01 : f32
    %159 = vector.broadcast %cst_104 : f32 to vector<32x16xf32>
    %160 = arith.mulf %159, %158 : vector<32x16xf32>
    %161 = arith.mulf %148, %160 : vector<32x16xf32>
    %162 = arith.truncf %161 : vector<32x16xf32> to vector<32x16xbf16>
    %c1_105 = arith.constant 1 : index
    %c0_106 = arith.constant 0 : index
    %c0_107 = arith.constant 0 : index
    %163 = vector.load %arg8[%c1_105, %c0_106, %c0_107] : memref<2x16x32xbf16, #tpu.memory_space<vmem>>, vector<1x16x32xbf16>
    %164 = vector.shape_cast %163 : vector<1x16x32xbf16> to vector<16x32xbf16>
    %cst_108 = arith.constant dense<0.000000e+00> : vector<32x32xf32>
    %165 = tpu.matmul %162, %164, %cst_108 {dimension_numbers = #tpu.dot_dimension_numbers<[1], [0], [0], [1], [0, 0, 1, 1], [], []>} : vector<32x16xbf16>, vector<16x32xbf16>, vector<32x32xf32> -> vector<32x32xf32>
    %c1_109 = arith.constant 1 : index
    %c0_110 = arith.constant 0 : index
    %c0_111 = arith.constant 0 : index
    %166 = vector.load %arg9[%c1_109, %c0_110, %c0_111] : memref<2x1x32xf32, #tpu.memory_space<vmem>>, vector<1x1x32xf32>
    %167 = vector.shape_cast %166 : vector<1x1x32xf32> to vector<1x32xf32>
    %168 = vector.broadcast %167 : vector<1x32xf32> to vector<32x32xf32>
    %169 = arith.mulf %165, %168 : vector<32x32xf32>
    %c1_112 = arith.constant 1 : index
    %c0_113 = arith.constant 0 : index
    %c0_114 = arith.constant 0 : index
    %170 = vector.load %arg10[%c1_112, %c0_113, %c0_114] : memref<2x1x32xf32, #tpu.memory_space<vmem>>, vector<1x1x32xf32>
    %171 = vector.shape_cast %170 : vector<1x1x32xf32> to vector<1x32xf32>
    %172 = vector.broadcast %171 : vector<1x32xf32> to vector<32x32xf32>
    %173 = arith.addf %169, %172 : vector<32x32xf32>
    %c0_115 = arith.constant 0 : index
    %c0_116 = arith.constant 0 : index
    %174 = vector.load %arg13[%c0_115, %c0_116] : memref<32x32xf32, #tpu.memory_space<vmem>>, vector<32x32xf32>
    %175 = arith.addf %174, %173 : vector<32x32xf32>
    %c0_117 = arith.constant 0 : index
    %c0_118 = arith.constant 0 : index
    %176 = vector.load %arg13[%c0_117, %c0_118] : memref<32x32xf32, #tpu.memory_space<vmem>>, vector<32x32xf32>
    tpu.vector_store %arg13[%c0_117, %c0_118], %175 {strides = array<i32>} : memref<32x32xf32, #tpu.memory_space<vmem>>, vector<32x32xf32>,
    %c0_119 = arith.constant 0 : index
    %c0_120 = arith.constant 0 : index
    %177 = vector.load %arg13[%c0_119, %c0_120] : memref<32x32xf32, #tpu.memory_space<vmem>>, vector<32x32xf32>
    %178 = arith.mulf %177, %177 : vector<32x32xf32>
    %179 = arith.mulf %177, %178 : vector<32x32xf32>
    %cst_121 = arith.constant 4.471500e-02 : f32
    %180 = vector.broadcast %cst_121 : f32 to vector<32x32xf32>
    %181 = arith.mulf %180, %179 : vector<32x32xf32>
    %182 = arith.addf %177, %181 : vector<32x32xf32>
    %cst_122 = arith.constant 0.797884583 : f32
    %183 = vector.broadcast %cst_122 : f32 to vector<32x32xf32>
    %184 = arith.mulf %183, %182 : vector<32x32xf32>
    %185 = math.tanh %184 : vector<32x32xf32>
    %cst_123 = arith.constant 1.000000e+00 : f32
    %186 = vector.broadcast %cst_123 : f32 to vector<32x32xf32>
    %187 = arith.addf %186, %185 : vector<32x32xf32>
    %cst_124 = arith.constant 5.000000e-01 : f32
    %188 = vector.broadcast %cst_124 : f32 to vector<32x32xf32>
    %189 = arith.mulf %188, %187 : vector<32x32xf32>
    %190 = arith.mulf %177, %189 : vector<32x32xf32>
    %c0_125 = arith.constant 0 : index
    %c0_126 = arith.constant 0 : index
    %191 = vector.load %arg11[%c0_125, %c0_126] : memref<1x32xf32, #tpu.memory_space<vmem>>, vector<1x32xf32>
    %192 = vector.broadcast %191 : vector<1x32xf32> to vector<32x32xf32>
    %193 = arith.mulf %190, %192 : vector<32x32xf32>
    %cst_127 = arith.constant dense<0.000000e+00> : vector<32xf32>
    %194 = vector.multi_reduction <add>, %193, %cst_127 [1] : vector<32x32xf32> to vector<32xf32>
    %195 = vector.shape_cast %194 : vector<32xf32> to vector<32x1xf32>
    %c0_128 = arith.constant 0 : index
    %c0_129 = arith.constant 0 : index
    %c0_130 = arith.constant 0 : index
    %196 = vector.load %arg12[%c0_128, %c0_129, %c0_130] : memref<1x32x1xf32, #tpu.memory_space<vmem>>, vector<1x32x1xf32>
    %197 = vector.shape_cast %196 : vector<1x32x1xf32> to vector<32x1xf32>
    %198 = vector.shape_cast %195 : vector<32x1xf32> to vector<1x32x1xf32>
    tpu.vector_store %arg12[%c0_128, %c0_129, %c0_130], %198 {strides = array<i32>} : memref<1x32x1xf32, #tpu.memory_space<vmem>>, vector<1x32x1xf32>,
    return
  }
  func.func @transform_0(%arg0: i32) -> (i32, i32, i32) {
    %c0_i32 = arith.constant 0 : i32
    %c0_i32_0 = arith.constant 0 : i32
    %c0_i32_1 = arith.constant 0 : i32
    return %arg0, %c0_i32, %c0_i32_0 : i32, i32, i32
  }
  func.func @transform_1(%arg0: i32) -> (i32, i32, i32) {
    %c0_i32 = arith.constant 0 : i32
    %c0_i32_0 = arith.constant 0 : i32
    %c0_i32_1 = arith.constant 0 : i32
    return %arg0, %c0_i32, %c0_i32_0 : i32, i32, i32
  }
  func.func @transform_2(%arg0: i32) -> (i32, i32) {
    %c0_i32 = arith.constant 0 : i32
    %c0_i32_0 = arith.constant 0 : i32
    %c0_i32_1 = arith.constant 0 : i32
    return %c0_i32, %c0_i32_0 : i32, i32
  }
  func.func @transform_3(%arg0: i32) -> (i32, i32) {
    %c0_i32 = arith.constant 0 : i32
    %c0_i32_0 = arith.constant 0 : i32
    %c0_i32_1 = arith.constant 0 : i32
    return %c0_i32, %c0_i32_0 : i32, i32
  }
  func.func @transform_4(%arg0: i32) -> (i32, i32, i32, i32) {
    %c0_i32 = arith.constant 0 : i32
    %c0_i32_0 = arith.constant 0 : i32
    %c0_i32_1 = arith.constant 0 : i32
    %c0_i32_2 = arith.constant 0 : i32
    %c0_i32_3 = arith.constant 0 : i32
    return %c0_i32, %c0_i32_0, %c0_i32_1, %c0_i32_2 : i32, i32, i32, i32
  }
  func.func @transform_5(%arg0: i32) -> (i32, i32, i32) {
    %c0_i32 = arith.constant 0 : i32
    %c0_i32_0 = arith.constant 0 : i32
    %c0_i32_1 = arith.constant 0 : i32
    %c0_i32_2 = arith.constant 0 : i32
    return %c0_i32, %c0_i32_0, %c0_i32_1 : i32, i32, i32
  }
  func.func @transform_6(%arg0: i32) -> (i32, i32, i32) {
    %c0_i32 = arith.constant 0 : i32
    %c0_i32_0 = arith.constant 0 : i32
    %c0_i32_1 = arith.constant 0 : i32
    %c0_i32_2 = arith.constant 0 : i32
    return %c0_i32, %c0_i32_0, %c0_i32_1 : i32, i32, i32
  }
  func.func @transform_7(%arg0: i32) -> (i32, i32, i32) {
    %c0_i32 = arith.constant 0 : i32
    %c0_i32_0 = arith.constant 0 : i32
    %c0_i32_1 = arith.constant 0 : i32
    %c0_i32_2 = arith.constant 0 : i32
    return %c0_i32, %c0_i32_0, %c0_i32_1 : i32, i32, i32
  }
  func.func @transform_8(%arg0: i32) -> (i32, i32, i32) {
    %c0_i32 = arith.constant 0 : i32
    %c0_i32_0 = arith.constant 0 : i32
    %c0_i32_1 = arith.constant 0 : i32
    %c0_i32_2 = arith.constant 0 : i32
    return %c0_i32, %c0_i32_0, %c0_i32_1 : i32, i32, i32
  }
  func.func @transform_9(%arg0: i32) -> (i32, i32, i32) {
    %c0_i32 = arith.constant 0 : i32
    %c0_i32_0 = arith.constant 0 : i32
    %c0_i32_1 = arith.constant 0 : i32
    %c0_i32_2 = arith.constant 0 : i32
    return %c0_i32, %c0_i32_0, %c0_i32_1 : i32, i32, i32
  }
  func.func @transform_10(%arg0: i32) -> (i32, i32) {
    %c0_i32 = arith.constant 0 : i32
    %c0_i32_0 = arith.constant 0 : i32
    %c0_i32_1 = arith.constant 0 : i32
    return %c0_i32, %c0_i32_0 : i32, i32
  }
  func.func @transform_11(%arg0: i32) -> (i32, i32, i32) {
    %c0_i32 = arith.constant 0 : i32
    %c0_i32_0 = arith.constant 0 : i32
    %c0_i32_1 = arith.constant 0 : i32
    return %arg0, %c0_i32, %c0_i32_0 : i32, i32, i32
  }
}

</mosaic_0001>

<llo_original>
// kernel: tpu_custom_call.1
$region0: #{tpu_custom_call.1}
  #allocation0 [shape = 'u32[]', space=smem, size = 0x4, offset = 0x4, fixed_abs, tag = 'smem constant byte address 0x4 - core index']
  #allocation1 [shape = 'u32[72,128]{1,0:T(1,128)}', space=vmem, size = 0x9000, scoped, tag = 'internal scratch']
  #allocation2 [shape = 'f32[32,32]{1,0:T(8,128)}', space=vmem, size = 0x4000, scoped, tag = 'scratch operand']
  #allocation3 [shape = 'bf16[64,32]{1,0:T(8,128)(2,1)}', space=vmem, size = 0x4000, scoped, tag = 'scratch operand']
  %s0 = inlined_call_operand.vmem [shape: bf16[2,32,28], index: 0, kind: input, shape index: {}]
  %s1 = inlined_call_operand.vmem [shape: bf16[2,32,28], index: 1, kind: input, shape index: {}]
  %s2 = inlined_call_operand.vmem [shape: bf16[28,32], index: 2, kind: input, shape index: {}]
  %s3 = inlined_call_operand.vmem [shape: f32[1,32], index: 3, kind: input, shape index: {}]
  %s4 = inlined_call_operand.vmem [shape: bf16[2,3,32,16], index: 4, kind: input, shape index: {}]
  %s5 = inlined_call_operand.vmem [shape: f32[2,1,16], index: 5, kind: input, shape index: {}]
  %s6 = inlined_call_operand.vmem [shape: f32[2,1,16], index: 6, kind: input, shape index: {}]
  %s7 = inlined_call_operand.vmem [shape: bf16[2,16,32], index: 7, kind: input, shape index: {}]
  %s8 = inlined_call_operand.vmem [shape: f32[2,1,32], index: 8, kind: input, shape index: {}]
  %s9 = inlined_call_operand.vmem [shape: f32[2,1,32], index: 9, kind: input, shape index: {}]
  %s10 = inlined_call_operand.vmem [shape: f32[1,32], index: 10, kind: input, shape index: {}]
  %s11 = inlined_call_operand.vmem [shape: f32[2,32,1], index: 11, kind: output, shape index: {}]
  %s12 = sld [smem:[#allocation0]]
  $region81: #{tpu_custom_call.1} parent=0
    _
  %s14 = ssub.s32 1, %s12
  %s15 = scalar_select 0, %s14, %s12
  loop: start=0, step=1, limit=4
  $region2: #{tpu_custom_call.1} parent=0 // loop_pre_header
    _
  $region3: #{tpu_custom_call.1} parent=0 // loop_header
    %s17 = sphi 0, %s21
    %p18 = scmp.ge.s32.totalorder %s17, 4
    %s27 = sphi 0, %s29
    %s30 = sphi 0, %s27
    %s31 = sphi 0, %s30
    %s47 = sphi 0, %s31
    %s53 = sphi 0, %s55
    %s56 = sphi 0, %s53
    %s57 = sphi 0, %s56
    %s73 = sphi 0, %s57
    %s77 = sphi 0, %s77
    %s79 = sphi 0, %s77
    %s80 = sphi 0, %s79
    %s94 = sphi 0, %s80
    %s98 = sphi 0, %s98
    %s100 = sphi 0, %s98
    %s101 = sphi 0, %s100
    %s115 = sphi 0, %s101
    %s119 = sphi 0, %s119
    %s121 = sphi 0, %s119
    %s122 = sphi 0, %s121
    %s136 = sphi 0, %s122
    %s140 = sphi 0, %s140
    %s142 = sphi 0, %s140
    %s143 = sphi 0, %s142
    %s157 = sphi 0, %s143
    %s161 = sphi 0, %s161
    %s163 = sphi 0, %s161
    %s164 = sphi 0, %s163
    %s178 = sphi 0, %s164
    %s182 = sphi 0, %s182
    %s184 = sphi 0, %s182
    %s185 = sphi 0, %s184
    %s199 = sphi 0, %s185
    %s203 = sphi 0, %s203
    %s205 = sphi 0, %s203
    %s206 = sphi 0, %s205
    %s220 = sphi 0, %s206
    %s224 = sphi 0, %s224
    %s226 = sphi 0, %s224
    %s227 = sphi 0, %s226
    %s241 = sphi 0, %s227
    %s245 = sphi 0, %s245
    %s247 = sphi 0, %s245
    %s248 = sphi 0, %s247
    %s262 = sphi 0, %s248
    %s268 = sphi 0, %s270
    %s271 = sphi 0, %s268
    %s272 = sphi 0, %s271
    %s288 = sphi 0, %s272
  $region4: #{tpu_custom_call.1} parent=0 // loop_header_branch
    %20 = sbr.rel (%p18) target = $region8
  $region5: #{tpu_custom_call.1} parent=0 // loop_body
    %s22 = ssub.s32 %s17, 1
    %s23 = ssub.s32 %s17, 2
    %s24 = sadd.s32 %s17, 1
    %s25 = ssub.s32 %s17, %s24
    %p26 = scmp.eq.s32.totalorder %s25, 0
    %s28 = sadd.s32 %s27, 1
    %s29 = scalar_select %p26, %s27, %s28
    %p32 = pneg %p26
    %p33 = scmp.eq.s32.totalorder %s17, 1
    %p34 = por %p32, %p33
    %p35 = scmp.ne.s32.totalorder %s27, %s30
    %p36 = scmp.eq.s32.totalorder %s17, 0
    %p37 = por %p35, %p36
    %p38 = scmp.ne.s32.totalorder %s27, %s30
    %p39 = scmp.eq.s32.totalorder %s22, 1
    %p40 = por %p38, %p39
    %p41 = scmp.ne.s32.totalorder %s30, %s31
    %p42 = scmp.eq.s32.totalorder %s22, 0
    %p43 = por %p41, %p42
    %p44 = scmp.ne.s32.totalorder %s30, %s31
    %p45 = scmp.eq.s32.totalorder %s23, 1
    %p46 = por %p44, %p45
    %p48 = scmp.ne.s32.totalorder %s31, %s47
    %p49 = scmp.eq.s32.totalorder %s23, 0
    %p50 = por %p48, %p49
    %s51 = ssub.s32 %s17, %s24
    %p52 = scmp.eq.s32.totalorder %s51, 0
    %s54 = sadd.s32 %s53, 1
    %s55 = scalar_select %p52, %s53, %s54
    %p58 = pneg %p52
    %p59 = scmp.eq.s32.totalorder %s17, 1
    %p60 = por %p58, %p59
    %p61 = scmp.ne.s32.totalorder %s53, %s56
    %p62 = scmp.eq.s32.totalorder %s17, 0
    %p63 = por %p61, %p62
    %p64 = scmp.ne.s32.totalorder %s53, %s56
    %p65 = scmp.eq.s32.totalorder %s22, 1
    %p66 = por %p64, %p65
    %p67 = scmp.ne.s32.totalorder %s56, %s57
    %p68 = scmp.eq.s32.totalorder %s22, 0
    %p69 = por %p67, %p68
    %p70 = scmp.ne.s32.totalorder %s56, %s57
    %p71 = scmp.eq.s32.totalorder %s23, 1
    %p72 = por %p70, %p71
    %p74 = scmp.ne.s32.totalorder %s57, %s73
    %p75 = scmp.eq.s32.totalorder %s23, 0
    %p76 = por %p74, %p75
    %s78 = sadd.s32 %s77, 1
    %p81 = scmp.eq.s32.totalorder %s17, 1
    %p82 = scmp.ne.s32.totalorder %s77, %s79
    %p83 = scmp.eq.s32.totalorder %s17, 0
    %p84 = por %p82, %p83
    %p85 = scmp.ne.s32.totalorder %s77, %s79
    %p86 = scmp.eq.s32.totalorder %s22, 1
    %p87 = por %p85, %p86
    %p88 = scmp.ne.s32.totalorder %s79, %s80
    %p89 = scmp.eq.s32.totalorder %s22, 0
    %p90 = por %p88, %p89
    %p91 = scmp.ne.s32.totalorder %s79, %s80
    %p92 = scmp.eq.s32.totalorder %s23, 1
    %p93 = por %p91, %p92
    %p95 = scmp.ne.s32.totalorder %s80, %s94
    %p96 = scmp.eq.s32.totalorder %s23, 0
    %p97 = por %p95, %p96
    %s99 = sadd.s32 %s98, 1
    %p102 = scmp.eq.s32.totalorder %s17, 1
    %p103 = scmp.ne.s32.totalorder %s98, %s100
    %p104 = scmp.eq.s32.totalorder %s17, 0
    %p105 = por %p103, %p104
    %p106 = scmp.ne.s32.totalorder %s98, %s100
    %p107 = scmp.eq.s32.totalorder %s22, 1
    %p108 = por %p106, %p107
    %p109 = scmp.ne.s32.totalorder %s100, %s101
    %p110 = scmp.eq.s32.totalorder %s22, 0
    %p111 = por %p109, %p110
    %p112 = scmp.ne.s32.totalorder %s100, %s101
    %p113 = scmp.eq.s32.totalorder %s23, 1
    %p114 = por %p112, %p113
    %p116 = scmp.ne.s32.totalorder %s101, %s115
    %p117 = scmp.eq.s32.totalorder %s23, 0
    %p118 = por %p116, %p117
    %s120 = sadd.s32 %s119, 1
    %p123 = scmp.eq.s32.totalorder %s17, 1
    %p124 = scmp.ne.s32.totalorder %s119, %s121
    %p125 = scmp.eq.s32.totalorder %s17, 0
    %p126 = por %p124, %p125
    %p127 = scmp.ne.s32.totalorder %s119, %s121
    %p128 = scmp.eq.s32.totalorder %s22, 1
    %p129 = por %p127, %p128
    %p130 = scmp.ne.s32.totalorder %s121, %s122
    %p131 = scmp.eq.s32.totalorder %s22, 0
    %p132 = por %p130, %p131
    %p133 = scmp.ne.s32.totalorder %s121, %s122
    %p134 = scmp.eq.s32.totalorder %s23, 1
    %p135 = por %p133, %p134
    %p137 = scmp.ne.s32.totalorder %s122, %s136
    %p138 = scmp.eq.s32.totalorder %s23, 0
    %p139 = por %p137, %p138
    %s141 = sadd.s32 %s140, 1
    %p144 = scmp.eq.s32.totalorder %s17, 1
    %p145 = scmp.ne.s32.totalorder %s140, %s142
    %p146 = scmp.eq.s32.totalorder %s17, 0
    %p147 = por %p145, %p146
    %p148 = scmp.ne.s32.totalorder %s140, %s142
    %p149 = scmp.eq.s32.totalorder %s22, 1
    %p150 = por %p148, %p149
    %p151 = scmp.ne.s32.totalorder %s142, %s143
    %p152 = scmp.eq.s32.totalorder %s22, 0
    %p153 = por %p151, %p152
    %p154 = scmp.ne.s32.totalorder %s142, %s143
    %p155 = scmp.eq.s32.totalorder %s23, 1
    %p156 = por %p154, %p155
    %p158 = scmp.ne.s32.totalorder %s143, %s157
    %p159 = scmp.eq.s32.totalorder %s23, 0
    %p160 = por %p158, %p159
    %s162 = sadd.s32 %s161, 1
    %p165 = scmp.eq.s32.totalorder %s17, 1
    %p166 = scmp.ne.s32.totalorder %s161, %s163
    %p167 = scmp.eq.s32.totalorder %s17, 0
    %p168 = por %p166, %p167
    %p169 = scmp.ne.s32.totalorder %s161, %s163
    %p170 = scmp.eq.s32.totalorder %s22, 1
    %p171 = por %p169, %p170
    %p172 = scmp.ne.s32.totalorder %s163, %s164
    %p173 = scmp.eq.s32.totalorder %s22, 0
    %p174 = por %p172, %p173
    %p175 = scmp.ne.s32.totalorder %s163, %s164
    %p176 = scmp.eq.s32.totalorder %s23, 1
    %p177 = por %p175, %p176
    %p179 = scmp.ne.s32.totalorder %s164, %s178
    %p180 = scmp.eq.s32.totalorder %s23, 0
    %p181 = por %p179, %p180
    %s183 = sadd.s32 %s182, 1
    %p186 = scmp.eq.s32.totalorder %s17, 1
    %p187 = scmp.ne.s32.totalorder %s182, %s184
    %p188 = scmp.eq.s32.totalorder %s17, 0
    %p189 = por %p187, %p188
    %p190 = scmp.ne.s32.totalorder %s182, %s184
    %p191 = scmp.eq.s32.totalorder %s22, 1
    %p192 = por %p190, %p191
    %p193 = scmp.ne.s32.totalorder %s184, %s185
    %p194 = scmp.eq.s32.totalorder %s22, 0
    %p195 = por %p193, %p194
    %p196 = scmp.ne.s32.totalorder %s184, %s185
    %p197 = scmp.eq.s32.totalorder %s23, 1
    %p198 = por %p196, %p197
    %p200 = scmp.ne.s32.totalorder %s185, %s199
    %p201 = scmp.eq.s32.totalorder %s23, 0
    %p202 = por %p200, %p201
    %s204 = sadd.s32 %s203, 1
    %p207 = scmp.eq.s32.totalorder %s17, 1
    %p208 = scmp.ne.s32.totalorder %s203, %s205
    %p209 = scmp.eq.s32.totalorder %s17, 0
    %p210 = por %p208, %p209
    %p211 = scmp.ne.s32.totalorder %s203, %s205
    %p212 = scmp.eq.s32.totalorder %s22, 1
    %p213 = por %p211, %p212
    %p214 = scmp.ne.s32.totalorder %s205, %s206
    %p215 = scmp.eq.s32.totalorder %s22, 0
    %p216 = por %p214, %p215
    %p217 = scmp.ne.s32.totalorder %s205, %s206
    %p218 = scmp.eq.s32.totalorder %s23, 1
    %p219 = por %p217, %p218
    %p221 = scmp.ne.s32.totalorder %s206, %s220
    %p222 = scmp.eq.s32.totalorder %s23, 0
    %p223 = por %p221, %p222
    %s225 = sadd.s32 %s224, 1
    %p228 = scmp.eq.s32.totalorder %s17, 1
    %p229 = scmp.ne.s32.totalorder %s224, %s226
    %p230 = scmp.eq.s32.totalorder %s17, 0
    %p231 = por %p229, %p230
    %p232 = scmp.ne.s32.totalorder %s224, %s226
    %p233 = scmp.eq.s32.totalorder %s22, 1
    %p234 = por %p232, %p233
    %p235 = scmp.ne.s32.totalorder %s226, %s227
    %p236 = scmp.eq.s32.totalorder %s22, 0
    %p237 = por %p235, %p236
    %p238 = scmp.ne.s32.totalorder %s226, %s227
    %p239 = scmp.eq.s32.totalorder %s23, 1
    %p240 = por %p238, %p239
    %p242 = scmp.ne.s32.totalorder %s227, %s241
    %p243 = scmp.eq.s32.totalorder %s23, 0
    %p244 = por %p242, %p243
    %s246 = sadd.s32 %s245, 1
    %p249 = scmp.eq.s32.totalorder %s17, 1
    %p250 = scmp.ne.s32.totalorder %s245, %s247
    %p251 = scmp.eq.s32.totalorder %s17, 0
    %p252 = por %p250, %p251
    %p253 = scmp.ne.s32.totalorder %s245, %s247
    %p254 = scmp.eq.s32.totalorder %s22, 1
    %p255 = por %p253, %p254
    %p256 = scmp.ne.s32.totalorder %s247, %s248
    %p257 = scmp.eq.s32.totalorder %s22, 0
    %p258 = por %p256, %p257
    %p259 = scmp.ne.s32.totalorder %s247, %s248
    %p260 = scmp.eq.s32.totalorder %s23, 1
    %p261 = por %p259, %p260
    %p263 = scmp.ne.s32.totalorder %s248, %s262
    %p264 = scmp.eq.s32.totalorder %s23, 0
    %p265 = por %p263, %p264
    %s266 = ssub.s32 %s17, %s24
    %p267 = scmp.eq.s32.totalorder %s266, 0
    %s269 = sadd.s32 %s268, 1
    %s270 = scalar_select %p267, %s268, %s269
    %p273 = pneg %p267
    %p274 = scmp.eq.s32.totalorder %s17, 1
    %p275 = por %p273, %p274
    %p276 = scmp.ne.s32.totalorder %s268, %s271
    %p277 = scmp.eq.s32.totalorder %s17, 0
    %p278 = por %p276, %p277
    %p279 = scmp.ne.s32.totalorder %s268, %s271
    %p280 = scmp.eq.s32.totalorder %s22, 1
    %p281 = por %p279, %p280
    %p282 = scmp.ne.s32.totalorder %s271, %s272
    %p283 = scmp.eq.s32.totalorder %s22, 0
    %p284 = por %p282, %p283
    %p285 = scmp.ne.s32.totalorder %s271, %s272
    %p286 = scmp.eq.s32.totalorder %s23, 1
    %p287 = por %p285, %p286
    %p289 = scmp.ne.s32.totalorder %s272, %s288
    %p290 = scmp.eq.s32.totalorder %s23, 0
    %p291 = por %p289, %p290
    %p292 = scmp.le.s32.totalorder 1, %s17
    %p293 = scmp.lt.s32.totalorder %s17, 3
    %p294 = pnand %p292, %p293
    %p295 = pneg %p294
    // Predicated region
    $region9: #{tpu_custom_call.1} parent=5 // pred_check
      _
    $region10: #{tpu_custom_call.1} parent=5 // pred_check_branch
      %297 = sbr.rel (%p294) target = $region12
    $region11: #{tpu_custom_call.1} parent=5 // pred_region
      %s298 = ssub.s32 %s17, 1
      // Predicated region
      $region13: #{tpu_custom_call.1} parent=11 // pred_check
        %p299 = pneg %p90
      $region14: #{tpu_custom_call.1} parent=11 // pred_check_branch
        %301 = sbr.rel (%p299) target = $region16
      $region15: #{tpu_custom_call.1} parent=11 // pred_region
        _
      $region16: #{tpu_custom_call.1} parent=11 // pred_fallthru
        _
      // Predicated region
      $region17: #{tpu_custom_call.1} parent=11 // pred_check
        %p302 = pneg %p111
      $region18: #{tpu_custom_call.1} parent=11 // pred_check_branch
        %304 = sbr.rel (%p302) target = $region20
      $region19: #{tpu_custom_call.1} parent=11 // pred_region
        _
      $region20: #{tpu_custom_call.1} parent=11 // pred_fallthru
        _
      // Predicated region
      $region21: #{tpu_custom_call.1} parent=11 // pred_check
        %p305 = pneg %p132
      $region22: #{tpu_custom_call.1} parent=11 // pred_check_branch
        %307 = sbr.rel (%p305) target = $region24
      $region23: #{tpu_custom_call.1} parent=11 // pred_region
        _
      $region24: #{tpu_custom_call.1} parent=11 // pred_fallthru
        _
      // Predicated region
      $region25: #{tpu_custom_call.1} parent=11 // pred_check
        %p308 = pneg %p153
      $region26: #{tpu_custom_call.1} parent=11 // pred_check_branch
        %310 = sbr.rel (%p308) target = $region28
      $region27: #{tpu_custom_call.1} parent=11 // pred_region
        _
      $region28: #{tpu_custom_call.1} parent=11 // pred_fallthru
        _
      // Predicated region
      $region29: #{tpu_custom_call.1} parent=11 // pred_check
        %p311 = pneg %p174
      $region30: #{tpu_custom_call.1} parent=11 // pred_check_branch
        %313 = sbr.rel (%p311) target = $region32
      $region31: #{tpu_custom_call.1} parent=11 // pred_region
        _
      $region32: #{tpu_custom_call.1} parent=11 // pred_fallthru
        _
      // Predicated region
      $region33: #{tpu_custom_call.1} parent=11 // pred_check
        %p314 = pneg %p195
      $region34: #{tpu_custom_call.1} parent=11 // pred_check_branch
        %316 = sbr.rel (%p314) target = $region36
      $region35: #{tpu_custom_call.1} parent=11 // pred_region
        _
      $region36: #{tpu_custom_call.1} parent=11 // pred_fallthru
        _
      // Predicated region
      $region37: #{tpu_custom_call.1} parent=11 // pred_check
        %p317 = pneg %p216
      $region38: #{tpu_custom_call.1} parent=11 // pred_check_branch
        %319 = sbr.rel (%p317) target = $region40
      $region39: #{tpu_custom_call.1} parent=11 // pred_region
        _
      $region40: #{tpu_custom_call.1} parent=11 // pred_fallthru
        _
      // Predicated region
      $region41: #{tpu_custom_call.1} parent=11 // pred_check
        %p320 = pneg %p237
      $region42: #{tpu_custom_call.1} parent=11 // pred_check_branch
        %322 = sbr.rel (%p320) target = $region44
      $region43: #{tpu_custom_call.1} parent=11 // pred_region
        _
      $region44: #{tpu_custom_call.1} parent=11 // pred_fallthru
        _
      // Predicated region
      $region45: #{tpu_custom_call.1} parent=11 // pred_check
        %p323 = pneg %p258
      $region46: #{tpu_custom_call.1} parent=11 // pred_check_branch
        %325 = sbr.rel (%p323) target = $region48
      $region47: #{tpu_custom_call.1} parent=11 // pred_region
        _
      $region48: #{tpu_custom_call.1} parent=11 // pred_fallthru
        _
    $region12: #{tpu_custom_call.1} parent=5 // pred_fallthru
      _
    %p326 = scmp.lt.s32.totalorder %s17, 2
    // Predicated region
    $region49: #{tpu_custom_call.1} parent=5 // pred_check
      %p327 = pneg %p326
    $region50: #{tpu_custom_call.1} parent=5 // pred_check_branch
      %329 = sbr.rel (%p327) target = $region52
    $region51: #{tpu_custom_call.1} parent=5 // pred_region
      // Predicated region
      $region53: #{tpu_custom_call.1} parent=51 // pred_check
        %p330 = pneg %p37
      $region54: #{tpu_custom_call.1} parent=51 // pred_check_branch
        %332 = sbr.rel (%p330) target = $region56
      $region55: #{tpu_custom_call.1} parent=51 // pred_region
        %p333 = scmp.lt.s32.totalorder %s17, 1
        %s334 = scalar_select %p333, %s17, 1
        %s335 = smul.addr %s334, 4
        %s336 = smul.addr %s335, 4
        %s337 = scalar_lea.vmem %s0, %s336
      $region56: #{tpu_custom_call.1} parent=51 // pred_fallthru
        _
      // Predicated region
      $region57: #{tpu_custom_call.1} parent=51 // pred_check
        %p338 = pneg %p63
      $region58: #{tpu_custom_call.1} parent=51 // pred_check_branch
        %340 = sbr.rel (%p338) target = $region60
      $region59: #{tpu_custom_call.1} parent=51 // pred_region
        %p341 = scmp.lt.s32.totalorder %s17, 1
        %s342 = scalar_select %p341, %s17, 1
        %s343 = smul.addr %s342, 4
        %s344 = smul.addr %s343, 4
        %s345 = scalar_lea.vmem %s1, %s344
      $region60: #{tpu_custom_call.1} parent=51 // pred_fallthru
        _
    $region52: #{tpu_custom_call.1} parent=5 // pred_fallthru
      _
    %p346 = scmp.le.s32.totalorder 1, %s17
    %p347 = scmp.lt.s32.totalorder %s17, 3
    %p348 = pnand %p346, %p347
    %p349 = pneg %p348
    // Predicated region
    $region61: #{tpu_custom_call.1} parent=5 // pred_check
      _
    $region62: #{tpu_custom_call.1} parent=5 // pred_check_branch
      %351 = sbr.rel (%p348) target = $region64
    $region63: #{tpu_custom_call.1} parent=5 // pred_region
      %s352 = ssub.s32 %s17, 1
      %p353 = scmp.lt.s32.totalorder %s22, 1
      %s354 = scalar_select %p353, %s22, 1
      %s355 = smul.addr %s354, 4
      %s356 = smul.addr %s355, 4
      %s357 = scalar_lea.vmem %s0, %s356
      %p358 = pneg %p43
      %p359 = pneg %p40
      %p360 = scmp.lt.s32.totalorder %s22, 1
      %s361 = scalar_select %p360, %s22, 1
      %s362 = smul.addr %s361, 4
      %s363 = smul.addr %s362, 4
      %s364 = scalar_lea.vmem %s1, %s363
      %p365 = pneg %p69
      %p366 = pneg %p66
      %p367 = pneg %p90
      %p368 = pneg %p87
      %p369 = pneg %p111
      %p370 = pneg %p108
      %p371 = pneg %p132
      %p372 = pneg %p129
      %p373 = pneg %p153
      %p374 = pneg %p150
      %p375 = pneg %p174
      %p376 = pneg %p171
      %p377 = pneg %p195
      %p378 = pneg %p192
      %p379 = pneg %p216
      %p380 = pneg %p213
      %p381 = pneg %p237
      %p382 = pneg %p234
      %p383 = pneg %p258
      %p384 = pneg %p255
      %p385 = pneg %p284
      %p386 = pneg %p281
      %p387 = scmp.lt.s32.totalorder %s22, 1
      %s388 = scalar_select %p387, %s22, 1
      %s389 = smul.addr %s388, 4
      %s390 = smul.addr %s389, 8
      %s391 = scalar_lea.vmem %s11, %s390
      %p392 = scmp.lt.s32.totalorder %s22, 1
      %s393 = scalar_select %p392, %s22, 1
      %s394 = smul.addr %s393, 4
      %s395 = smul.addr %s394, 4
      %s396 = scalar_lea.vmem %s0, %s395
      %p397 = scmp.lt.s32.totalorder %s22, 1
      %s398 = scalar_select %p397, %s22, 1
      %s399 = smul.addr %s398, 4
      %s400 = smul.addr %s399, 4
      %s401 = scalar_lea.vmem %s1, %s400
      %p402 = scmp.lt.s32.totalorder %s22, 1
      %s403 = scalar_select %p402, %s22, 1
      %s404 = smul.addr %s403, 4
      %s405 = smul.addr %s404, 8
      %s406 = scalar_lea.vmem %s11, %s405
      %v408 = vld [vmem:[%s2] sm:$0xf]
      %v409 = vld [vmem:[%s2 + $0x4] sm:$0xf]
      %v410 = vld [vmem:[%s2 + $0x8] sm:$0xf]
      %v411 = vld [vmem:[%s2 + $0xc] sm:$0x3]
      %v412 = vld [vmem:[%s3] sm:$0x1]
      %v413 = vld [vmem:[%s396] sm:$0xf]
      %v414 = vld [vmem:[%s396 + $0x4] sm:$0xf]
      %v415 = vld [vmem:[%s396 + $0x8] sm:$0xf]
      %v416 = vld [vmem:[%s396 + $0xc] sm:$0xf]
      %v418 = vperm.slane %v412, 0
      %v424 = vunpack.c.l.b16 %v413
      %v425 = vunpack.c.l.b16 %v414
      %v426 = vunpack.c.l.b16 %v415
      %v427 = vunpack.c.l.b16 %v416
      %v428 = vpack.c.b16 %v425, %v424
      %v429 = vpack.c.b16 %v427, %v426
      %v434 = vunpack.c.l.b16 %v408
      %v435 = vunpack.c.l.b16 %v409
      %v436 = vunpack.c.l.b16 %v410
      %v437 = vunpack.c.l.b16 %v411
      %v438 = vpack.c.b16 %v435, %v434
      %v439 = vpack.c.b16 %v437, %v436
      %vm441 = vcmask 228352
      %v443 = vsel %vm441, %v428, 0
      %v446 = vsel %vm441, %v429, 0
      %vm448 = vcmask 1045504
      %v450 = vsel %vm448, %v439, 0
      %452 = vmatpush.bf16.msra.mxu0 0
      %453 = vmatpush.bf16.msra.mxu0 0
      %454 = vmatpush.bf16.msra.mxu0 0
      %455 = vmatpush.bf16.msra.mxu0 0
      %456 = vmatpush.bf16.msra.mxu0 0
      %457 = vmatpush.bf16.msra.mxu0 0
      %458 = vmatpush.bf16.msra.mxu0 %v450
      %459 = vmatpush.bf16.msra.mxu0 %v438
      %460 = vmatmul.bf16.gmra.mxu0 %v443
      %v461 = vpop.f32.mrf.mxu0
      %v462 = vadd.f32 %v418, %v461
      %v463 = vpop.f32.mrf.mxu0
      %v464 = vadd.f32 %v418, %v463
      %465 = vmatmul.bf16.gmra.mxu0 %v446
      %v466 = vpop.f32.mrf.mxu0
      %v467 = vadd.f32 %v418, %v466
      %v468 = vpop.f32.mrf.mxu0
      %v469 = vadd.f32 %v418, %v468
      %470 = vdwg.mxu0
      %v471 = vmul.f32 %v462, %v462
      %v472 = vmul.f32 %v464, %v464
      %v473 = vmul.f32 %v467, %v467
      %v474 = vmul.f32 %v469, %v469
      %v475 = vmul.f32 %v462, %v471
      %v476 = vmul.f32 %v464, %v472
      %v477 = vmul.f32 %v467, %v473
      %v478 = vmul.f32 %v469, %v474
      %v479 = vmul.f32 %v475, 0.044715
      %v480 = vmul.f32 %v476, 0.044715
      %v481 = vmul.f32 %v477, 0.044715
      %v482 = vmul.f32 %v478, 0.044715
      %v483 = vadd.f32 %v462, %v479
      %v484 = vadd.f32 %v464, %v480
      %v485 = vadd.f32 %v467, %v481
      %v486 = vadd.f32 %v469, %v482
      %v487 = vmul.f32 %v483, 0.7978846
      %v488 = vmul.f32 %v484, 0.7978846
      %v489 = vmul.f32 %v485, 0.7978846
      %v490 = vmul.f32 %v486, 0.7978846
      %v491 = vtanh.pop %v487
      %v492 = vtanh.pop %v488
      %v493 = vtanh.pop %v489
      %v494 = vtanh.pop %v490
      %v495 = vadd.f32 %v491, 1.0
      %v496 = vadd.f32 %v492, 1.0
      %v497 = vadd.f32 %v493, 1.0
      %v498 = vadd.f32 %v494, 1.0
      %v499 = vmul.f32 %v495, 0.5
      %v500 = vmul.f32 %v496, 0.5
      %v501 = vmul.f32 %v497, 0.5
      %v502 = vmul.f32 %v498, 0.5
      %v503 = vmul.f32 %v462, %v499
      %v504 = vmul.f32 %v464, %v500
      %v505 = vmul.f32 %v467, %v501
      %v506 = vmul.f32 %v469, %v502
      %v507 = vld [vmem:[%s401] sm:$0xf]
      %v508 = vld [vmem:[%s401 + $0x4] sm:$0xf]
      %v509 = vld [vmem:[%s401 + $0x8] sm:$0xf]
      %v510 = vld [vmem:[%s401 + $0xc] sm:$0xf]
      %v515 = vunpack.c.l.b16 %v507
      %v516 = vunpack.c.l.b16 %v508
      %v517 = vunpack.c.l.b16 %v509
      %v518 = vunpack.c.l.b16 %v510
      %v519 = vpack.c.b16 %v516, %v515
      %v520 = vpack.c.b16 %v518, %v517
      %v522 = vsel %vm441, %v519, 0
      %v525 = vsel %vm441, %v520, 0
      %527 = vmatpush.bf16.msra.mxu0 0
      %528 = vmatpush.bf16.msra.mxu0 0
      %529 = vmatpush.bf16.msra.mxu0 0
      %530 = vmatpush.bf16.msra.mxu0 0
      %531 = vmatpush.bf16.msra.mxu0 0
      %532 = vmatpush.bf16.msra.mxu0 0
      %533 = vmatpush.bf16.msra.mxu0 %v450
      %534 = vmatpush.bf16.msra.mxu0 %v438
      %535 = vmatmul.bf16.gmra.mxu0 %v522
      %v536 = vpop.f32.mrf.mxu0
      %v537 = vadd.f32 %v418, %v536
      %v538 = vpop.f32.mrf.mxu0
      %v539 = vadd.f32 %v418, %v538
      %540 = vmatmul.bf16.gmra.mxu0 %v525
      %v541 = vpop.f32.mrf.mxu0
      %v542 = vadd.f32 %v418, %v541
      %v543 = vpop.f32.mrf.mxu0
      %v544 = vadd.f32 %v418, %v543
      %545 = vdwg.mxu0
      %v546 = vmul.f32 %v537, %v537
      %v547 = vmul.f32 %v539, %v539
      %v548 = vmul.f32 %v542, %v542
      %v549 = vmul.f32 %v544, %v544
      %v550 = vmul.f32 %v537, %v546
      %v551 = vmul.f32 %v539, %v547
      %v552 = vmul.f32 %v542, %v548
      %v553 = vmul.f32 %v544, %v549
      %v554 = vmul.f32 %v550, 0.044715
      %v555 = vmul.f32 %v551, 0.044715
      %v556 = vmul.f32 %v552, 0.044715
      %v557 = vmul.f32 %v553, 0.044715
      %v558 = vadd.f32 %v537, %v554
      %v559 = vadd.f32 %v539, %v555
      %v560 = vadd.f32 %v542, %v556
      %v561 = vadd.f32 %v544, %v557
      %v562 = vmul.f32 %v558, 0.7978846
      %v563 = vmul.f32 %v559, 0.7978846
      %v564 = vmul.f32 %v560, 0.7978846
      %v565 = vmul.f32 %v561, 0.7978846
      %v566 = vtanh.pop %v562
      %v567 = vtanh.pop %v563
      %v568 = vtanh.pop %v564
      %v569 = vtanh.pop %v565
      %v570 = vadd.f32 %v566, 1.0
      %v571 = vadd.f32 %v567, 1.0
      %v572 = vadd.f32 %v568, 1.0
      %v573 = vadd.f32 %v569, 1.0
      %v574 = vmul.f32 %v570, 0.5
      %v575 = vmul.f32 %v571, 0.5
      %v576 = vmul.f32 %v572, 0.5
      %v577 = vmul.f32 %v573, 0.5
      %v578 = vmul.f32 %v537, %v574
      %v579 = vmul.f32 %v539, %v575
      %v580 = vmul.f32 %v542, %v576
      %v581 = vmul.f32 %v544, %v577
      %v582 = vmax.f32 %v503, %v578
      %v583 = vmax.f32 %v504, %v579
      %v584 = vmax.f32 %v505, %v580
      %v585 = vmax.f32 %v506, %v581
      %vm586 = vcmask 261120
      %587 = vst.msk [vmem:[#allocation2] sm:$0xff] %vm586, %v582
      %588 = vst.msk [vmem:[#allocation2 + $0x8] sm:$0xff] %vm586, %v583
      %589 = vst.msk [vmem:[#allocation2 + $0x10] sm:$0xff] %vm586, %v584
      %590 = vst.msk [vmem:[#allocation2 + $0x18] sm:$0xff] %vm586, %v585
      %v591 = vmax.f32 %v503, 0.0
      %vm592 = vcmask 253952
      %593 = vst.msk [vmem:[#allocation2] sm:$0x1] %vm592, %v591
      %p594 = scmp.eq.s32.totalorder %s22, 0
      // Predicated region
      $region65: #{tpu_custom_call.1} parent=63 // pred_check
        %p595 = pneg %p594
      $region66: #{tpu_custom_call.1} parent=63 // pred_check_branch
        %597 = sbr.rel (%p595) target = $region68
      $region67: #{tpu_custom_call.1} parent=63 // pred_region
        %vm598 = vcmask 257024
        %599 = vst.msk [vmem:[#allocation3] sm:$0xf] %vm598, 0
        %600 = vst.msk [vmem:[#allocation3 + $0x4] sm:$0xf] %vm598, 0
        %601 = vst.msk [vmem:[#allocation3 + $0x18] sm:$0xf] %vm598, 0
        %602 = vst.msk [vmem:[#allocation3 + $0x1c] sm:$0xf] %vm598, 0
      $region68: #{tpu_custom_call.1} parent=63 // pred_fallthru
        _
      %v603 = vld [vmem:[#allocation2] sm:$0xff]
      %v604 = vld [vmem:[#allocation2 + $0x8] sm:$0xff]
      %v605 = vld [vmem:[#allocation2 + $0x10] sm:$0xff]
      %v606 = vld [vmem:[#allocation2 + $0x18] sm:$0xff]
      %v607 = vmul.f32 %v603, %v603
      %v608 = vmul.f32 %v604, %v604
      %v609 = vmul.f32 %v605, %v605
      %v610 = vmul.f32 %v606, %v606
      %v611 = vmul.f32 %v603, %v607
      %v612 = vmul.f32 %v604, %v608
      %v613 = vmul.f32 %v605, %v609
      %v614 = vmul.f32 %v606, %v610
      %v615 = vmul.f32 %v611, 0.044715
      %v616 = vmul.f32 %v612, 0.044715
      %v617 = vmul.f32 %v613, 0.044715
      %v618 = vmul.f32 %v614, 0.044715
      %v619 = vadd.f32 %v603, %v615
      %v620 = vadd.f32 %v604, %v616
      %v621 = vadd.f32 %v605, %v617
      %v622 = vadd.f32 %v606, %v618
      %v623 = vmul.f32 %v619, 0.7978846
      %v624 = vmul.f32 %v620, 0.7978846
      %v625 = vmul.f32 %v621, 0.7978846
      %v626 = vmul.f32 %v622, 0.7978846
      %v627 = vtanh.pop %v623
      %v628 = vtanh.pop %v624
      %v629 = vtanh.pop %v625
      %v630 = vtanh.pop %v626
      %v631 = vadd.f32 %v627, 1.0
      %v632 = vadd.f32 %v628, 1.0
      %v633 = vadd.f32 %v629, 1.0
      %v634 = vadd.f32 %v630, 1.0
      %v635 = vmul.f32 %v631, 0.5
      %v636 = vmul.f32 %v632, 0.5
      %v637 = vmul.f32 %v633, 0.5
      %v638 = vmul.f32 %v634, 0.5
      %v639 = vmul.f32 %v603, %v635
      %v640 = vmul.f32 %v604, %v636
      %v641 = vmul.f32 %v605, %v637
      %v642 = vmul.f32 %v606, %v638
      %v643 = vpack.c.bf16 %v639, %v639
      %v644 = vpack.c.bf16 %v640, %v640
      %v645 = vpack.c.bf16 %v641, %v641
      %v646 = vpack.c.bf16 %v642, %v642
      %vm647 = vcmask 257024
      %648 = vst.msk [vmem:[#allocation3 + $0x8] sm:$0xf] %vm647, %v643
      %649 = vst.msk [vmem:[#allocation3 + $0xc] sm:$0xf] %vm647, %v644
      %650 = vst.msk [vmem:[#allocation3 + $0x10] sm:$0xf] %vm647, %v645
      %651 = vst.msk [vmem:[#allocation3 + $0x14] sm:$0xf] %vm647, %v646
      %v652 = vld [vmem:[#allocation3 + $0x4] sm:$0x8]
      %v653 = vld [vmem:[#allocation3 + $0x8] sm:$0xf]
      %v654 = vld [vmem:[#allocation3 + $0xc] sm:$0xf]
      %v655 = vld [vmem:[#allocation3 + $0x10] sm:$0xf]
      %v656 = vld [vmem:[#allocation3 + $0x14] sm:$0xf]
      %v657 = vld [vmem:[#allocation3 + $0x18] sm:$0x1]
      %v658 = vld [vmem:[%s4] sm:$0xf]
      %v659 = vld [vmem:[%s4 + $0x4] sm:$0xf]
      %v660 = vld [vmem:[%s4 + $0x8] sm:$0xf]
      %v661 = vld [vmem:[%s4 + $0xc] sm:$0xf]
      %s662 = scalar_lea.vmem %s4, 16
      %v663 = vld [vmem:[%s662] sm:$0xf]
      %v664 = vld [vmem:[%s662 + $0x4] sm:$0xf]
      %v665 = vld [vmem:[%s662 + $0x8] sm:$0xf]
      %v666 = vld [vmem:[%s662 + $0xc] sm:$0xf]
      %v671 = vunpack.c.l.b16 %v643
      %v672 = vunpack.c.l.b16 %v644
      %v673 = vunpack.c.l.b16 %v645
      %v674 = vunpack.c.l.b16 %v646
      %v675 = vpack.c.b16 %v672, %v671
      %v676 = vpack.c.b16 %v674, %v673
      %v681 = vunpack.c.l.b16 %v663
      %v682 = vunpack.c.l.b16 %v664
      %v683 = vunpack.c.l.b16 %v665
      %v684 = vunpack.c.l.b16 %v666
      %v685 = vpack.c.b16 %v682, %v681
      %v686 = vpack.c.b16 %v684, %v683
      %v690 = vsel %vm586, %v675, 0
      %v693 = vsel %vm586, %v676, 0
      %695 = vmatpush.bf16.msra.mxu0 0
      %696 = vmatpush.bf16.msra.mxu0 0
      %697 = vmatpush.bf16.msra.mxu0 0
      %698 = vmatpush.bf16.msra.mxu0 0
      %699 = vmatpush.bf16.msra.mxu0 0
      %700 = vmatpush.bf16.msra.mxu0 0
      %701 = vmatpush.bf16.msra.mxu0 %v686
      %702 = vmatpush.bf16.msra.mxu0 %v685
      %703 = vmatmul.bf16.gmra.mxu0 %v690
      %v704 = vpop.f32.mrf.mxu0
      %v705 = vadd.f32 0.0, %v704
      %v706 = vpop.f32.mrf.mxu0
      %v707 = vadd.f32 0.0, %v706
      %708 = vmatmul.bf16.gmra.mxu0 %v693
      %v709 = vpop.f32.mrf.mxu0
      %v710 = vadd.f32 0.0, %v709
      %v711 = vpop.f32.mrf.mxu0
      %v712 = vadd.f32 0.0, %v711
      %713 = vdwg.mxu0
      %v719 = vunpack.c.l.b16 %v652
      %v720 = vunpack.c.l.b16 %v653
      %v721 = vunpack.c.l.b16 %v654
      %v722 = vunpack.c.l.b16 %v655
      %v723 = vunpack.c.l.b16 %v656
      %v724 = vpack.c.b16 %v720, %v719
      %v725 = vpack.c.b16 %v722, %v721
      %v726 = vpack.c.b16 %v723, %v723
      %vm727 = vsmask.f32 4352
      %v729 = vshrl.u32 %v724, 16
      %v731 = vrot.slane %v729, 3
      %v732 = vshll.u32 %v724, 16
      %v734 = vrot.slane %v732, 4
      %v735 = vor.u32 %v731, %v734
      %v737 = vshrl.u32 %v725, 16
      %v739 = vrot.slane %v737, 3
      %v740 = vshll.u32 %v725, 16
      %v742 = vrot.slane %v740, 4
      %v743 = vor.u32 %v739, %v742
      %v744 = vsel %vm727, %v735, %v743
      %v746 = vshrl.u32 %v726, 16
      %v748 = vrot.slane %v746, 3
      %v749 = vshll.u32 %v726, 16
      %v751 = vrot.slane %v749, 4
      %v752 = vor.u32 %v748, %v751
      %v753 = vsel %vm727, %v743, %v752
      %v758 = vunpack.c.l.b16 %v658
      %v759 = vunpack.c.l.b16 %v659
      %v760 = vunpack.c.l.b16 %v660
      %v761 = vunpack.c.l.b16 %v661
      %v762 = vpack.c.b16 %v759, %v758
      %v763 = vpack.c.b16 %v761, %v760
      %v767 = vsel %vm586, %v744, 0
      %v770 = vsel %vm586, %v753, 0
      %772 = vmatpush.bf16.msra.mxu0 0
      %773 = vmatpush.bf16.msra.mxu0 0
      %774 = vmatpush.bf16.msra.mxu0 0
      %775 = vmatpush.bf16.msra.mxu0 0
      %776 = vmatpush.bf16.msra.mxu0 0
      %777 = vmatpush.bf16.msra.mxu0 0
      %778 = vmatpush.bf16.msra.mxu0 %v763
      %779 = vmatpush.bf16.msra.mxu0 %v762
      %780 = vmatmul.bf16.gmra.mxu0 %v767
      %v781 = vpop.f32.mrf.mxu0
      %v782 = vadd.f32 %v705, %v781
      %v783 = vpop.f32.mrf.mxu0
      %v784 = vadd.f32 %v707, %v783
      %785 = vmatmul.bf16.gmra.mxu0 %v770
      %v786 = vpop.f32.mrf.mxu0
      %v787 = vadd.f32 %v710, %v786
      %v788 = vpop.f32.mrf.mxu0
      %v789 = vadd.f32 %v712, %v788
      %790 = vdwg.mxu0
      %s791 = scalar_lea.vmem %s4, 32
      %v792 = vld [vmem:[%s791] sm:$0xf]
      %v793 = vld [vmem:[%s791 + $0x4] sm:$0xf]
      %v794 = vld [vmem:[%s791 + $0x8] sm:$0xf]
      %v795 = vld [vmem:[%s791 + $0xc] sm:$0xf]
      %v797 = vunpack.c.l.b16 %v657
      %v798 = vpack.c.b16 %v721, %v720
      %v799 = vpack.c.b16 %v723, %v722
      %v800 = vpack.c.b16 %v797, %v797
      %vm801 = vsmask.f32 7424
      %v803 = vshrl.u32 %v798, 16
      %v805 = vshll.u32 %v798, 16
      %v807 = vrot.slane %v805, 1
      %v808 = vor.u32 %v803, %v807
      %v810 = vshll.u32 %v799, 16
      %v812 = vrot.slane %v810, 1
      %v813 = vsel %vm801, %v808, %v812
      %v814 = vshrl.u32 %v799, 16
      %v816 = vor.u32 %v814, %v812
      %v818 = vshll.u32 %v800, 16
      %v820 = vrot.slane %v818, 1
      %v821 = vsel %vm801, %v816, %v820
      %v826 = vunpack.c.l.b16 %v792
      %v827 = vunpack.c.l.b16 %v793
      %v828 = vunpack.c.l.b16 %v794
      %v829 = vunpack.c.l.b16 %v795
      %v830 = vpack.c.b16 %v827, %v826
      %v831 = vpack.c.b16 %v829, %v828
      %v835 = vsel %vm586, %v813, 0
      %v838 = vsel %vm586, %v821, 0
      %840 = vmatpush.bf16.msra.mxu0 0
      %841 = vmatpush.bf16.msra.mxu0 0
      %842 = vmatpush.bf16.msra.mxu0 0
      %843 = vmatpush.bf16.msra.mxu0 0
      %844 = vmatpush.bf16.msra.mxu0 0
      %845 = vmatpush.bf16.msra.mxu0 0
      %846 = vmatpush.bf16.msra.mxu0 %v831
      %847 = vmatpush.bf16.msra.mxu0 %v830
      %848 = vmatmul.bf16.gmra.mxu0 %v835
      %v849 = vpop.f32.mrf.mxu0
      %v850 = vadd.f32 0.0, %v849
      %v851 = vpop.f32.mrf.mxu0
      %v852 = vadd.f32 0.0, %v851
      %853 = vmatmul.bf16.gmra.mxu0 %v838
      %v854 = vpop.f32.mrf.mxu0
      %v855 = vadd.f32 0.0, %v854
      %v856 = vpop.f32.mrf.mxu0
      %v857 = vadd.f32 0.0, %v856
      %858 = vdwg.mxu0
      %v859 = vadd.f32 %v782, %v850
      %v860 = vadd.f32 %v784, %v852
      %v861 = vadd.f32 %v787, %v855
      %v862 = vadd.f32 %v789, %v857
      %v863 = vld [vmem:[%s5] sm:$0x1]
      %v865 = vperm.slane %v863, 0
      %v867 = vmul.f32 %v859, %v865
      %v868 = vmul.f32 %v860, %v865
      %v869 = vmul.f32 %v861, %v865
      %v870 = vmul.f32 %v862, %v865
      %v871 = vld [vmem:[%s6] sm:$0x1]
      %v873 = vperm.slane %v871, 0
      %v875 = vadd.f32 %v867, %v873
      %v876 = vadd.f32 %v868, %v873
      %v877 = vadd.f32 %v869, %v873
      %v878 = vadd.f32 %v870, %v873
      %v879 = vmul.f32 %v875, %v875
      %v880 = vmul.f32 %v876, %v876
      %v881 = vmul.f32 %v877, %v877
      %v882 = vmul.f32 %v878, %v878
      %v883 = vmul.f32 %v875, %v879
      %v884 = vmul.f32 %v876, %v880
      %v885 = vmul.f32 %v877, %v881
      %v886 = vmul.f32 %v878, %v882
      %v887 = vmul.f32 %v883, 0.044715
      %v888 = vmul.f32 %v884, 0.044715
      %v889 = vmul.f32 %v885, 0.044715
      %v890 = vmul.f32 %v886, 0.044715
      %v891 = vadd.f32 %v875, %v887
      %v892 = vadd.f32 %v876, %v888
      %v893 = vadd.f32 %v877, %v889
      %v894 = vadd.f32 %v878, %v890
      %v895 = vmul.f32 %v891, 0.7978846
      %v896 = vmul.f32 %v892, 0.7978846
      %v897 = vmul.f32 %v893, 0.7978846
      %v898 = vmul.f32 %v894, 0.7978846
      %v899 = vtanh.pop %v895
      %v900 = vtanh.pop %v896
      %v901 = vtanh.pop %v897
      %v902 = vtanh.pop %v898
      %v903 = vadd.f32 %v899, 1.0
      %v904 = vadd.f32 %v900, 1.0
      %v905 = vadd.f32 %v901, 1.0
      %v906 = vadd.f32 %v902, 1.0
      %v907 = vmul.f32 %v903, 0.5
      %v908 = vmul.f32 %v904, 0.5
      %v909 = vmul.f32 %v905, 0.5
      %v910 = vmul.f32 %v906, 0.5
      %v911 = vmul.f32 %v875, %v907
      %v912 = vmul.f32 %v876, %v908
      %v913 = vmul.f32 %v877, %v909
      %v914 = vmul.f32 %v878, %v910
      %v915 = vpack.c.bf16 %v912, %v911
      %v916 = vpack.c.bf16 %v914, %v913
      %v917 = vld [vmem:[%s7] sm:$0xf]
      %v918 = vld [vmem:[%s7 + $0x4] sm:$0xf]
      %v921 = vunpack.c.l.b16 %v917
      %v922 = vunpack.c.l.b16 %v918
      %v923 = vpack.c.b16 %v922, %v921
      %vm925 = vcmask 130048
      %v927 = vsel %vm925, %v915, 0
      %v930 = vsel %vm925, %v916, 0
      %932 = vmatpush.bf16.msra.mxu0 0
      %933 = vmatpush.bf16.msra.mxu0 0
      %934 = vmatpush.bf16.msra.mxu0 0
      %935 = vmatpush.bf16.msra.mxu0 0
      %936 = vmatpush.bf16.msra.mxu0 0
      %937 = vmatpush.bf16.msra.mxu0 0
      %938 = vmatpush.bf16.msra.mxu0 0
      %939 = vmatpush.bf16.msra.mxu0 %v923
      %940 = vmatmul.bf16.gmra.mxu0 %v927
      %v941 = vpop.f32.mrf.mxu0
      %v942 = vadd.f32 0.0, %v941
      %v943 = vpop.f32.mrf.mxu0
      %v944 = vadd.f32 0.0, %v943
      %945 = vmatmul.bf16.gmra.mxu0 %v930
      %v946 = vpop.f32.mrf.mxu0
      %v947 = vadd.f32 0.0, %v946
      %v948 = vpop.f32.mrf.mxu0
      %v949 = vadd.f32 0.0, %v948
      %950 = vdwg.mxu0
      %v951 = vld [vmem:[%s8] sm:$0x1]
      %v953 = vperm.slane %v951, 0
      %v955 = vmul.f32 %v942, %v953
      %v956 = vmul.f32 %v944, %v953
      %v957 = vmul.f32 %v947, %v953
      %v958 = vmul.f32 %v949, %v953
      %v959 = vld [vmem:[%s9] sm:$0x1]
      %v961 = vperm.slane %v959, 0
      %v963 = vadd.f32 %v955, %v961
      %v964 = vadd.f32 %v956, %v961
      %v965 = vadd.f32 %v957, %v961
      %v966 = vadd.f32 %v958, %v961
      %v967 = vld [vmem:[#allocation2] sm:$0xff]
      %v968 = vld [vmem:[#allocation2 + $0x8] sm:$0xff]
      %v969 = vld [vmem:[#allocation2 + $0x10] sm:$0xff]
      %v970 = vld [vmem:[#allocation2 + $0x18] sm:$0xff]
      %v971 = vadd.f32 %v967, %v963
      %v972 = vadd.f32 %v968, %v964
      %v973 = vadd.f32 %v969, %v965
      %v974 = vadd.f32 %v970, %v966
      %975 = vst.msk [vmem:[#allocation2] sm:$0xff] %vm586, %v971
      %976 = vst.msk [vmem:[#allocation2 + $0x8] sm:$0xff] %vm586, %v972
      %977 = vst.msk [vmem:[#allocation2 + $0x10] sm:$0xff] %vm586, %v973
      %978 = vst.msk [vmem:[#allocation2 + $0x18] sm:$0xff] %vm586, %v974
      %v979 = vld [vmem:[#allocation2] sm:$0xff]
      %v980 = vld [vmem:[#allocation2 + $0x8] sm:$0xff]
      %v981 = vld [vmem:[#allocation2 + $0x10] sm:$0xff]
      %v982 = vld [vmem:[#allocation2 + $0x18] sm:$0xff]
      %v983 = vmul.f32 %v979, %v979
      %v984 = vmul.f32 %v980, %v980
      %v985 = vmul.f32 %v981, %v981
      %v986 = vmul.f32 %v982, %v982
      %v987 = vmul.f32 %v979, %v983
      %v988 = vmul.f32 %v980, %v984
      %v989 = vmul.f32 %v981, %v985
      %v990 = vmul.f32 %v982, %v986
      %v991 = vmul.f32 %v987, 0.044715
      %v992 = vmul.f32 %v988, 0.044715
      %v993 = vmul.f32 %v989, 0.044715
      %v994 = vmul.f32 %v990, 0.044715
      %v995 = vadd.f32 %v979, %v991
      %v996 = vadd.f32 %v980, %v992
      %v997 = vadd.f32 %v981, %v993
      %v998 = vadd.f32 %v982, %v994
      %v999 = vmul.f32 %v995, 0.7978846
      %v1000 = vmul.f32 %v996, 0.7978846
      %v1001 = vmul.f32 %v997, 0.7978846
      %v1002 = vmul.f32 %v998, 0.7978846
      %v1003 = vtanh.pop %v999
      %v1004 = vtanh.pop %v1000
      %v1005 = vtanh.pop %v1001
      %v1006 = vtanh.pop %v1002
      %v1007 = vadd.f32 %v1003, 1.0
      %v1008 = vadd.f32 %v1004, 1.0
      %v1009 = vadd.f32 %v1005, 1.0
      %v1010 = vadd.f32 %v1006, 1.0
      %v1011 = vmul.f32 %v1007, 0.5
      %v1012 = vmul.f32 %v1008, 0.5
      %v1013 = vmul.f32 %v1009, 0.5
      %v1014 = vmul.f32 %v1010, 0.5
      %v1015 = vmul.f32 %v979, %v1011
      %v1016 = vmul.f32 %v980, %v1012
      %v1017 = vmul.f32 %v981, %v1013
      %v1018 = vmul.f32 %v982, %v1014
      %v1019 = vpack.c.bf16 %v1015, %v1015
      %v1020 = vpack.c.bf16 %v1016, %v1016
      %v1021 = vpack.c.bf16 %v1017, %v1017
      %v1022 = vpack.c.bf16 %v1018, %v1018
      %1023 = vst.msk [vmem:[#allocation3 + $0x8] sm:$0xf] %vm647, %v1019
      %1024 = vst.msk [vmem:[#allocation3 + $0xc] sm:$0xf] %vm647, %v1020
      %1025 = vst.msk [vmem:[#allocation3 + $0x10] sm:$0xf] %vm647, %v1021
      %1026 = vst.msk [vmem:[#allocation3 + $0x14] sm:$0xf] %vm647, %v1022
      %v1027 = vld [vmem:[#allocation3 + $0x4] sm:$0x8]
      %v1028 = vld [vmem:[#allocation3 + $0x8] sm:$0xf]
      %v1029 = vld [vmem:[#allocation3 + $0xc] sm:$0xf]
      %v1030 = vld [vmem:[#allocation3 + $0x10] sm:$0xf]
      %v1031 = vld [vmem:[#allocation3 + $0x14] sm:$0x7]
      %v1032 = vld [vmem:[#allocation3 + $0x8] sm:$0xe]
      %v1033 = vld [vmem:[#allocation3 + $0x14] sm:$0xf]
      %v1034 = vld [vmem:[#allocation3 + $0x18] sm:$0x1]
      %s1035 = scalar_lea.vmem %s4, 48
      %v1036 = vld [vmem:[%s1035] sm:$0xf]
      %v1037 = vld [vmem:[%s1035 + $0x4] sm:$0xf]
      %v1038 = vld [vmem:[%s1035 + $0x8] sm:$0xf]
      %v1039 = vld [vmem:[%s1035 + $0xc] sm:$0xf]
      %s1040 = scalar_lea.vmem %s4, 64
      %v1041 = vld [vmem:[%s1040] sm:$0xf]
      %v1042 = vld [vmem:[%s1040 + $0x4] sm:$0xf]
      %v1043 = vld [vmem:[%s1040 + $0x8] sm:$0xf]
      %v1044 = vld [vmem:[%s1040 + $0xc] sm:$0xf]
      %v1049 = vunpack.c.l.b16 %v1019
      %v1050 = vunpack.c.l.b16 %v1020
      %v1051 = vunpack.c.l.b16 %v1021
      %v1052 = vunpack.c.l.b16 %v1022
      %v1053 = vpack.c.b16 %v1050, %v1049
      %v1054 = vpack.c.b16 %v1052, %v1051
      %v1059 = vunpack.c.l.b16 %v1041
      %v1060 = vunpack.c.l.b16 %v1042
      %v1061 = vunpack.c.l.b16 %v1043
      %v1062 = vunpack.c.l.b16 %v1044
      %v1063 = vpack.c.b16 %v1060, %v1059
      %v1064 = vpack.c.b16 %v1062, %v1061
      %v1068 = vsel %vm586, %v1053, 0
      %v1071 = vsel %vm586, %v1054, 0
      %1073 = vmatpush.bf16.msra.mxu0 0
      %1074 = vmatpush.bf16.msra.mxu0 0
      %1075 = vmatpush.bf16.msra.mxu0 0
      %1076 = vmatpush.bf16.msra.mxu0 0
      %1077 = vmatpush.bf16.msra.mxu0 0
      %1078 = vmatpush.bf16.msra.mxu0 0
      %1079 = vmatpush.bf16.msra.mxu0 %v1064
      %1080 = vmatpush.bf16.msra.mxu0 %v1063
      %1081 = vmatmul.bf16.gmra.mxu0 %v1068
      %v1082 = vpop.f32.mrf.mxu0
      %v1083 = vadd.f32 0.0, %v1082
      %v1084 = vpop.f32.mrf.mxu0
      %v1085 = vadd.f32 0.0, %v1084
      %1086 = vmatmul.bf16.gmra.mxu0 %v1071
      %v1087 = vpop.f32.mrf.mxu0
      %v1088 = vadd.f32 0.0, %v1087
      %v1089 = vpop.f32.mrf.mxu0
      %v1090 = vadd.f32 0.0, %v1089
      %1091 = vdwg.mxu0
      %v1097 = vunpack.c.l.b16 %v1027
      %v1098 = vunpack.c.l.b16 %v1028
      %v1099 = vunpack.c.l.b16 %v1029
      %v1100 = vunpack.c.l.b16 %v1030
      %v1101 = vunpack.c.l.b16 %v1031
      %v1102 = vpack.c.b16 %v1098, %v1097
      %v1103 = vpack.c.b16 %v1100, %v1099
      %v1104 = vpack.c.b16 %v1101, %v1101
      %vm1105 = vcmask 1044480
      %v1106 = vrot.slane %v1102, 3
      %v1107 = vrot.slane %v1103, 3
      %v1108 = vsel %vm1105, %v1106, %v1107
      %v1109 = vrot.slane %v1104, 3
      %v1110 = vsel %vm1105, %v1107, %v1109
      %v1115 = vunpack.c.l.b16 %v1036
      %v1116 = vunpack.c.l.b16 %v1037
      %v1117 = vunpack.c.l.b16 %v1038
      %v1118 = vunpack.c.l.b16 %v1039
      %v1119 = vpack.c.b16 %v1116, %v1115
      %v1120 = vpack.c.b16 %v1118, %v1117
      %v1124 = vsel %vm586, %v1108, 0
      %v1127 = vsel %vm586, %v1110, 0
      %1129 = vmatpush.bf16.msra.mxu0 0
      %1130 = vmatpush.bf16.msra.mxu0 0
      %1131 = vmatpush.bf16.msra.mxu0 0
      %1132 = vmatpush.bf16.msra.mxu0 0
      %1133 = vmatpush.bf16.msra.mxu0 0
      %1134 = vmatpush.bf16.msra.mxu0 0
      %1135 = vmatpush.bf16.msra.mxu0 %v1120
      %1136 = vmatpush.bf16.msra.mxu0 %v1119
      %1137 = vmatmul.bf16.gmra.mxu0 %v1124
      %v1138 = vpop.f32.mrf.mxu0
      %v1139 = vadd.f32 %v1083, %v1138
      %v1140 = vpop.f32.mrf.mxu0
      %v1141 = vadd.f32 %v1085, %v1140
      %1142 = vmatmul.bf16.gmra.mxu0 %v1127
      %v1143 = vpop.f32.mrf.mxu0
      %v1144 = vadd.f32 %v1088, %v1143
      %v1145 = vpop.f32.mrf.mxu0
      %v1146 = vadd.f32 %v1090, %v1145
      %1147 = vdwg.mxu0
      %s1148 = scalar_lea.vmem %s4, 80
      %v1149 = vld [vmem:[%s1148] sm:$0xf]
      %v1150 = vld [vmem:[%s1148 + $0x4] sm:$0xf]
      %v1151 = vld [vmem:[%s1148 + $0x8] sm:$0xf]
      %v1152 = vld [vmem:[%s1148 + $0xc] sm:$0xf]
      %v1156 = vunpack.c.l.b16 %v1032
      %v1157 = vunpack.c.l.b16 %v1033
      %v1158 = vunpack.c.l.b16 %v1034
      %v1159 = vpack.c.b16 %v1099, %v1156
      %v1160 = vpack.c.b16 %v1157, %v1100
      %v1161 = vpack.c.b16 %v1158, %v1158
      %vm1162 = vcmask 1046528
      %v1163 = vrot.slane %v1159, 1
      %v1164 = vrot.slane %v1160, 1
      %v1165 = vsel %vm1162, %v1163, %v1164
      %v1166 = vrot.slane %v1161, 1
      %v1167 = vsel %vm1162, %v1164, %v1166
      %v1172 = vunpack.c.l.b16 %v1149
      %v1173 = vunpack.c.l.b16 %v1150
      %v1174 = vunpack.c.l.b16 %v1151
      %v1175 = vunpack.c.l.b16 %v1152
      %v1176 = vpack.c.b16 %v1173, %v1172
      %v1177 = vpack.c.b16 %v1175, %v1174
      %v1181 = vsel %vm586, %v1165, 0
      %v1184 = vsel %vm586, %v1167, 0
      %1186 = vmatpush.bf16.msra.mxu0 0
      %1187 = vmatpush.bf16.msra.mxu0 0
      %1188 = vmatpush.bf16.msra.mxu0 0
      %1189 = vmatpush.bf16.msra.mxu0 0
      %1190 = vmatpush.bf16.msra.mxu0 0
      %1191 = vmatpush.bf16.msra.mxu0 0
      %1192 = vmatpush.bf16.msra.mxu0 %v1177
      %1193 = vmatpush.bf16.msra.mxu0 %v1176
      %1194 = vmatmul.bf16.gmra.mxu0 %v1181
      %v1195 = vpop.f32.mrf.mxu0
      %v1196 = vadd.f32 0.0, %v1195
      %v1197 = vpop.f32.mrf.mxu0
      %v1198 = vadd.f32 0.0, %v1197
      %1199 = vmatmul.bf16.gmra.mxu0 %v1184
      %v1200 = vpop.f32.mrf.mxu0
      %v1201 = vadd.f32 0.0, %v1200
      %v1202 = vpop.f32.mrf.mxu0
      %v1203 = vadd.f32 0.0, %v1202
      %1204 = vdwg.mxu0
      %v1205 = vadd.f32 %v1139, %v1196
      %v1206 = vadd.f32 %v1141, %v1198
      %v1207 = vadd.f32 %v1144, %v1201
      %v1208 = vadd.f32 %v1146, %v1203
      %s1209 = scalar_lea.vmem %s5, 1
      %v1210 = vld [vmem:[%s1209] sm:$0x1]
      %v1212 = vperm.slane %v1210, 0
      %v1214 = vmul.f32 %v1205, %v1212
      %v1215 = vmul.f32 %v1206, %v1212
      %v1216 = vmul.f32 %v1207, %v1212
      %v1217 = vmul.f32 %v1208, %v1212
      %s1218 = scalar_lea.vmem %s6, 1
      %v1219 = vld [vmem:[%s1218] sm:$0x1]
      %v1221 = vperm.slane %v1219, 0
      %v1223 = vadd.f32 %v1214, %v1221
      %v1224 = vadd.f32 %v1215, %v1221
      %v1225 = vadd.f32 %v1216, %v1221
      %v1226 = vadd.f32 %v1217, %v1221
      %v1227 = vmul.f32 %v1223, %v1223
      %v1228 = vmul.f32 %v1224, %v1224
      %v1229 = vmul.f32 %v1225, %v1225
      %v1230 = vmul.f32 %v1226, %v1226
      %v1231 = vmul.f32 %v1223, %v1227
      %v1232 = vmul.f32 %v1224, %v1228
      %v1233 = vmul.f32 %v1225, %v1229
      %v1234 = vmul.f32 %v1226, %v1230
      %v1235 = vmul.f32 %v1231, 0.044715
      %v1236 = vmul.f32 %v1232, 0.044715
      %v1237 = vmul.f32 %v1233, 0.044715
      %v1238 = vmul.f32 %v1234, 0.044715
      %v1239 = vadd.f32 %v1223, %v1235
      %v1240 = vadd.f32 %v1224, %v1236
      %v1241 = vadd.f32 %v1225, %v1237
      %v1242 = vadd.f32 %v1226, %v1238
      %v1243 = vmul.f32 %v1239, 0.7978846
      %v1244 = vmul.f32 %v1240, 0.7978846
      %v1245 = vmul.f32 %v1241, 0.7978846
      %v1246 = vmul.f32 %v1242, 0.7978846
      %v1247 = vtanh.pop %v1243
      %v1248 = vtanh.pop %v1244
      %v1249 = vtanh.pop %v1245
      %v1250 = vtanh.pop %v1246
      %v1251 = vadd.f32 %v1247, 1.0
      %v1252 = vadd.f32 %v1248, 1.0
      %v1253 = vadd.f32 %v1249, 1.0
      %v1254 = vadd.f32 %v1250, 1.0
      %v1255 = vmul.f32 %v1251, 0.5
      %v1256 = vmul.f32 %v1252, 0.5
      %v1257 = vmul.f32 %v1253, 0.5
      %v1258 = vmul.f32 %v1254, 0.5
      %v1259 = vmul.f32 %v1223, %v1255
      %v1260 = vmul.f32 %v1224, %v1256
      %v1261 = vmul.f32 %v1225, %v1257
      %v1262 = vmul.f32 %v1226, %v1258
      %v1263 = vpack.c.bf16 %v1260, %v1259
      %v1264 = vpack.c.bf16 %v1262, %v1261
      %s1265 = scalar_lea.vmem %s7, 8
      %v1266 = vld [vmem:[%s1265] sm:$0xf]
      %v1267 = vld [vmem:[%s1265 + $0x4] sm:$0xf]
      %v1270 = vunpack.c.l.b16 %v1266
      %v1271 = vunpack.c.l.b16 %v1267
      %v1272 = vpack.c.b16 %v1271, %v1270
      %v1275 = vsel %vm925, %v1263, 0
      %v1278 = vsel %vm925, %v1264, 0
      %1280 = vmatpush.bf16.msra.mxu0 0
      %1281 = vmatpush.bf16.msra.mxu0 0
      %1282 = vmatpush.bf16.msra.mxu0 0
      %1283 = vmatpush.bf16.msra.mxu0 0
      %1284 = vmatpush.bf16.msra.mxu0 0
      %1285 = vmatpush.bf16.msra.mxu0 0
      %1286 = vmatpush.bf16.msra.mxu0 0
      %1287 = vmatpush.bf16.msra.mxu0 %v1272
      %1288 = vmatmul.bf16.gmra.mxu0 %v1275
      %v1289 = vpop.f32.mrf.mxu0
      %v1290 = vadd.f32 0.0, %v1289
      %v1291 = vpop.f32.mrf.mxu0
      %v1292 = vadd.f32 0.0, %v1291
      %1293 = vmatmul.bf16.gmra.mxu0 %v1278
      %v1294 = vpop.f32.mrf.mxu0
      %v1295 = vadd.f32 0.0, %v1294
      %v1296 = vpop.f32.mrf.mxu0
      %v1297 = vadd.f32 0.0, %v1296
      %1298 = vdwg.mxu0
      %s1299 = scalar_lea.vmem %s8, 1
      %v1300 = vld [vmem:[%s1299] sm:$0x1]
      %v1302 = vperm.slane %v1300, 0
      %v1304 = vmul.f32 %v1290, %v1302
      %v1305 = vmul.f32 %v1292, %v1302
      %v1306 = vmul.f32 %v1295, %v1302
      %v1307 = vmul.f32 %v1297, %v1302
      %s1308 = scalar_lea.vmem %s9, 1
      %v1309 = vld [vmem:[%s1308] sm:$0x1]
      %v1311 = vperm.slane %v1309, 0
      %v1313 = vadd.f32 %v1304, %v1311
      %v1314 = vadd.f32 %v1305, %v1311
      %v1315 = vadd.f32 %v1306, %v1311
      %v1316 = vadd.f32 %v1307, %v1311
      %v1317 = vld [vmem:[#allocation2] sm:$0xff]
      %v1318 = vld [vmem:[#allocation2 + $0x8] sm:$0xff]
      %v1319 = vld [vmem:[#allocation2 + $0x10] sm:$0xff]
      %v1320 = vld [vmem:[#allocation2 + $0x18] sm:$0xff]
      %v1321 = vadd.f32 %v1317, %v1313
      %v1322 = vadd.f32 %v1318, %v1314
      %v1323 = vadd.f32 %v1319, %v1315
      %v1324 = vadd.f32 %v1320, %v1316
      %1325 = vst.msk [vmem:[#allocation2] sm:$0xff] %vm586, %v1321
      %1326 = vst.msk [vmem:[#allocation2 + $0x8] sm:$0xff] %vm586, %v1322
      %1327 = vst.msk [vmem:[#allocation2 + $0x10] sm:$0xff] %vm586, %v1323
      %1328 = vst.msk [vmem:[#allocation2 + $0x18] sm:$0xff] %vm586, %v1324
      %v1329 = vld [vmem:[#allocation2] sm:$0xff]
      %v1330 = vld [vmem:[#allocation2 + $0x8] sm:$0xff]
      %v1331 = vld [vmem:[#allocation2 + $0x10] sm:$0xff]
      %v1332 = vld [vmem:[#allocation2 + $0x18] sm:$0xff]
      %v1333 = vmul.f32 %v1329, %v1329
      %v1334 = vmul.f32 %v1330, %v1330
      %v1335 = vmul.f32 %v1331, %v1331
      %v1336 = vmul.f32 %v1332, %v1332
      %v1337 = vmul.f32 %v1329, %v1333
      %v1338 = vmul.f32 %v1330, %v1334
      %v1339 = vmul.f32 %v1331, %v1335
      %v1340 = vmul.f32 %v1332, %v1336
      %v1341 = vmul.f32 %v1337, 0.044715
      %v1342 = vmul.f32 %v1338, 0.044715
      %v1343 = vmul.f32 %v1339, 0.044715
      %v1344 = vmul.f32 %v1340, 0.044715
      %v1345 = vadd.f32 %v1329, %v1341
      %v1346 = vadd.f32 %v1330, %v1342
      %v1347 = vadd.f32 %v1331, %v1343
      %v1348 = vadd.f32 %v1332, %v1344
      %v1349 = vmul.f32 %v1345, 0.7978846
      %v1350 = vmul.f32 %v1346, 0.7978846
      %v1351 = vmul.f32 %v1347, 0.7978846
      %v1352 = vmul.f32 %v1348, 0.7978846
      %v1353 = vtanh.pop %v1349
      %v1354 = vtanh.pop %v1350
      %v1355 = vtanh.pop %v1351
      %v1356 = vtanh.pop %v1352
      %v1357 = vadd.f32 %v1353, 1.0
      %v1358 = vadd.f32 %v1354, 1.0
      %v1359 = vadd.f32 %v1355, 1.0
      %v1360 = vadd.f32 %v1356, 1.0
      %v1361 = vmul.f32 %v1357, 0.5
      %v1362 = vmul.f32 %v1358, 0.5
      %v1363 = vmul.f32 %v1359, 0.5
      %v1364 = vmul.f32 %v1360, 0.5
      %v1365 = vmul.f32 %v1329, %v1361
      %v1366 = vmul.f32 %v1330, %v1362
      %v1367 = vmul.f32 %v1331, %v1363
      %v1368 = vmul.f32 %v1332, %v1364
      %v1369 = vld [vmem:[%s10] sm:$0x1]
      %v1371 = vperm.slane %v1369, 0
      %v1373 = vmul.f32 %v1365, %v1371
      %v1374 = vmul.f32 %v1366, %v1371
      %v1375 = vmul.f32 %v1367, %v1371
      %v1376 = vmul.f32 %v1368, %v1371
      %v1377 = vsel %vm586, %v1373, 0.0
      %1378 = vadd.xlane.f32.xlu0 %v1377
      %v1379 = vpop.xlane.xlu0 %1378
      %v1380 = vsel %vm586, %v1374, 0.0
      %1381 = vadd.xlane.f32.xlu0 %v1380
      %v1382 = vpop.xlane.xlu0 %1381
      %v1383 = vsel %vm586, %v1375, 0.0
      %1384 = vadd.xlane.f32.xlu0 %v1383
      %v1385 = vpop.xlane.xlu0 %1384
      %v1386 = vsel %vm586, %v1376, 0.0
      %1387 = vadd.xlane.f32.xlu0 %v1386
      %v1388 = vpop.xlane.xlu0 %1387
      %vm1389 = vcmask 7168
      %1390 = vst.msk [vmem:[%s406] sm:$0xff] %vm1389, %v1379
      %1391 = vst.msk [vmem:[%s406 + $0x8] sm:$0xff] %vm1389, %v1382
      %1392 = vst.msk [vmem:[%s406 + $0x10] sm:$0xff] %vm1389, %v1385
      %1393 = vst.msk [vmem:[%s406 + $0x18] sm:$0xff] %vm1389, %v1388
      %p1394 = scmp.lt.s32.totalorder %s22, 1
      %s1395 = scalar_select %p1394, %s22, 1
      %s1396 = smul.addr %s1395, 4
      %s1397 = smul.addr %s1396, 8
      %s1398 = scalar_lea.vmem %s11, %s1397
      // Predicated region
      $region69: #{tpu_custom_call.1} parent=63 // pred_check
        %p1399 = pneg %p281
      $region70: #{tpu_custom_call.1} parent=63 // pred_check_branch
        %1401 = sbr.rel (%p1399) target = $region72
      $region71: #{tpu_custom_call.1} parent=63 // pred_region
        _
      $region72: #{tpu_custom_call.1} parent=63 // pred_fallthru
        _
    $region64: #{tpu_custom_call.1} parent=5 // pred_fallthru
      _
    %p1402 = scmp.le.s32.totalorder 2, %s17
    // Predicated region
    $region73: #{tpu_custom_call.1} parent=5 // pred_check
      %p1403 = pneg %p1402
    $region74: #{tpu_custom_call.1} parent=5 // pred_check_branch
      %1405 = sbr.rel (%p1403) target = $region76
    $region75: #{tpu_custom_call.1} parent=5 // pred_region
      %s1406 = ssub.s32 %s17, 2
      // Predicated region
      $region77: #{tpu_custom_call.1} parent=75 // pred_check
        %p1407 = pneg %p287
      $region78: #{tpu_custom_call.1} parent=75 // pred_check_branch
        %1409 = sbr.rel (%p1407) target = $region80
      $region79: #{tpu_custom_call.1} parent=75 // pred_region
        %p1410 = scmp.lt.s32.totalorder %s23, 1
        %s1411 = scalar_select %p1410, %s23, 1
        %s1412 = smul.addr %s1411, 4
        %s1413 = smul.addr %s1412, 8
        %s1414 = scalar_lea.vmem %s11, %s1413
      $region80: #{tpu_custom_call.1} parent=75 // pred_fallthru
        _
    $region76: #{tpu_custom_call.1} parent=5 // pred_fallthru
      _
  $region6: #{tpu_custom_call.1} parent=0 // loop_footer
    %s21 = sadd.s32 1, %s17
  $region7: #{tpu_custom_call.1} parent=0 // loop_footer_branch
    %16 = sbr.rel target = $region3
  $region8: #{tpu_custom_call.1} parent=0 // loop_exit
    _

</llo_original>
